<compile_context>
chip_gen: v6e
topology: v6e:2x2x1
jax: 0.10.0
libtpu: 0.0.40
codegen_flags: <defaults>
</compile_context>

<pallas_src>
import jax
import jax.numpy as jnp
from jax import lax
from jax.experimental import pallas as pl
from jax.experimental.pallas import tpu as pltpu


def _bottleneck_kernel(x_ref, w1_ref, h1_ref, su_ref, sd_ref,
                       b0_ref, b1_ref, b2_ref, h2_ref,
                       w3_ref, h3_ref, o_ref):
    x = x_ref[...].astype(jnp.float32)                        # (R, W*Cin)

    # conv1t (1x1) + bn1 (scale folded into the weights) + relu.
    t1 = jnp.dot(x, w1_ref[...], preferred_element_type=jnp.float32) + h1_ref[...]
    t1 = jnp.maximum(t1, 0.0)                                 # (R, W*Cmid)

    # conv2t (3x3, stride=1, pad=1) + bn2 + relu.
    # Row shifts (+-1 image row, zero at image borders) via (R,R) shift-matrix
    # matmuls; the W-direction taps live inside the block-banded b0/b1/b2.
    tu = jnp.dot(su_ref[...], t1, preferred_element_type=jnp.float32)   # t1[r+1]
    td = jnp.dot(sd_ref[...], t1, preferred_element_type=jnp.float32)   # t1[r-1]
    t2 = (jnp.dot(tu, b0_ref[...], preferred_element_type=jnp.float32)
          + jnp.dot(t1, b1_ref[...], preferred_element_type=jnp.float32)
          + jnp.dot(td, b2_ref[...], preferred_element_type=jnp.float32)
          + h2_ref[...])
    t2 = jnp.maximum(t2, 0.0)

    # conv3t (1x1) + bn3, residual add (upsample=None -> residual = x), relu.
    t3 = jnp.dot(t2, w3_ref[...], preferred_element_type=jnp.float32) + h3_ref[...]
    o_ref[...] = jnp.maximum(t3 + x, 0.0).astype(o_ref.dtype)


def bottleneck_block_transpose(x_nchw, params, eps=1e-5):
    N, Cin, H, W = x_nchw.shape
    # PyTorch ConvTranspose2d weights: (in_channels, out_channels, kH, kW)
    w1 = params['w1'][:, :, 0, 0]                      # (Cin,  Cmid)
    w2 = params['w2']                                  # (Cmid, Cmid, 3, 3)
    w3 = params['w3'][:, :, 0, 0]                      # (Cmid, Cout)
    Cmid = w1.shape[1]
    Cout = w3.shape[1]
    assert w2.shape == (Cmid, Cmid, 3, 3)
    assert Cin == Cout, "residual add requires in_planes == out_planes (upsample=None)"

    # Eval-mode BN folding: y = s*conv(x) + h  with  s = g/sqrt(v+eps),
    # h = (bias - mean)*s + beta.  The scale s is folded into the weights.
    def fold(bias, gamma, beta, mean, var):
        s = (gamma / jnp.sqrt(var + eps)).astype(jnp.float32)
        h = ((bias - mean) * s + beta).astype(jnp.float32)
        return s, h

    s1, h1 = fold(params['b1'], params['g1'], params['be1'], params['m1'], params['v1'])
    s2, h2 = fold(params['b2'], params['g2'], params['be2'], params['m2'], params['v2'])
    s3, h3 = fold(params['b3'], params['g3'], params['be3'], params['m3'], params['v3'])

    w1s = w1.astype(jnp.float32) * s1[None, :]
    w2s = w2.astype(jnp.float32) * s2[None, :, None, None]
    w3s = w3.astype(jnp.float32) * s3[None, :]

    # Row-packed layout: activations are (R, W*C) with R = N*H, channels packed
    # fastest along lanes.  Build the matching (one-time) weight operators.
    eyeW = jnp.eye(W, dtype=jnp.float32)
    bd1 = jnp.kron(eyeW, w1s)                          # block-diag (W*Cin, W*Cmid)
    bd3 = jnp.kron(eyeW, w3s)                          # block-diag (W*Cmid, W*Cout)

    # Block-banded 3x3 weights, one per kh.  out[q] pulls from q' = q+1-kw, so
    # tap kw sits on diagonal k = kw-1 of the (W,W) block structure.
    bands = []
    for kh in range(3):
        b = jnp.zeros((W * Cmid, W * Cmid), jnp.float32)
        for kw in range(3):
            b = b + jnp.kron(jnp.eye(W, k=kw - 1, dtype=jnp.float32),
                             w2s[:, :, kh, kw])
        bands.append(b)
    b0, b1m, b2 = bands

    h1r = jnp.tile(h1, W).reshape(1, W * Cmid)
    h2r = jnp.tile(h2, W).reshape(1, W * Cmid)
    h3r = jnp.tile(h3, W).reshape(1, W * Cout)

    # Shift matrices: su @ t gives t[r+1] (zero on the last row of each image),
    # sd @ t gives t[r-1] (zero on the first row of each image).
    R = N * H
    r = jnp.arange(R)
    p = r % H
    su = ((r[None, :] == r[:, None] + 1) & (p[:, None] != H - 1)).astype(jnp.float32)
    sd = ((r[None, :] == r[:, None] - 1) & (p[:, None] != 0)).astype(jnp.float32)

    # NCHW -> lane-dense row-packed (R, W*Cin).  (The module interface is NCHW;
    # this relayout is wrapper-side glue.)
    x_rows = jnp.transpose(x_nchw, (0, 2, 3, 1)).reshape(R, W * Cin)

    flops = 2 * (R * (W * Cin) * (W * Cmid)
                 + 2 * R * R * (W * Cmid)
                 + 3 * R * (W * Cmid) * (W * Cmid)
                 + R * (W * Cmid) * (W * Cout))
    bytes_accessed = 4 * (x_rows.size + R * W * Cout
                          + bd1.size + bd3.size + 3 * b0.size + 2 * su.size
                          + h1r.size + h2r.size + h3r.size)

    def full(shape):
        return pl.BlockSpec(shape, lambda i, _s=shape: tuple(0 for _ in _s))

    out_rows = pl.pallas_call(
        _bottleneck_kernel,
        out_shape=jax.ShapeDtypeStruct((R, W * Cout), x_nchw.dtype),
        grid_spec=pltpu.PrefetchScalarGridSpec(
            num_scalar_prefetch=0,
            grid=(1,),
            in_specs=[
                full((R, W * Cin)),            # x_rows
                full((W * Cin, W * Cmid)),     # bd1
                full((1, W * Cmid)),           # h1r
                full((R, R)),                  # su
                full((R, R)),                  # sd
                full((W * Cmid, W * Cmid)),    # b0
                full((W * Cmid, W * Cmid)),    # b1
                full((W * Cmid, W * Cmid)),    # b2
                full((1, W * Cmid)),           # h2r
                full((W * Cmid, W * Cout)),    # bd3
                full((1, W * Cout)),           # h3r
            ],
            out_specs=full((R, W * Cout)),
        ),
        compiler_params=pltpu.CompilerParams(dimension_semantics=("arbitrary",)),
        cost_estimate=pl.CostEstimate(flops=int(flops), transcendentals=0,
                                      bytes_accessed=int(bytes_accessed)),
    )(x_rows, bd1, h1r, su, sd, b0, b1m, b2, h2r, bd3, h3r)

    return jnp.transpose(out_rows.reshape(N, H, W, Cout), (0, 3, 1, 2))


def reference_forward(x, params, eps=1e-5):
    """Pure-JAX reference (NCHW), via the ConvTranspose==flipped-Conv identity."""
    def bn(z, g, b, m, v):
        return ((z - m[None, :, None, None])
                / jnp.sqrt(v[None, :, None, None] + eps)
                * g[None, :, None, None] + b[None, :, None, None])

    z = jnp.einsum('nihw,io->nohw', x, params['w1'][:, :, 0, 0]) \
        + params['b1'][None, :, None, None]
    z = jax.nn.relu(bn(z, params['g1'], params['be1'], params['m1'], params['v1']))
    # ConvTranspose2d(k=3, s=1, p=1) == Conv2d(weight = W.transpose(0,1).flip(2,3), p=1)
    wc = jnp.transpose(jnp.flip(params['w2'], axis=(2, 3)), (1, 0, 2, 3))  # OIHW
    z = lax.conv_general_dilated(z, wc, window_strides=(1, 1),
                                 padding=((1, 1), (1, 1)),
                                 dimension_numbers=('NCHW', 'OIHW', 'NCHW'))
    z = z + params['b2'][None, :, None, None]
    z = jax.nn.relu(bn(z, params['g2'], params['be2'], params['m2'], params['v2']))
    z = jnp.einsum('nihw,io->nohw', z, params['w3'][:, :, 0, 0]) \
        + params['b3'][None, :, None, None]
    z = bn(z, params['g3'], params['be3'], params['m3'], params['v3'])
    return jax.nn.relu(z + x)


if __name__ == "__main__":
    key = jax.random.PRNGKey(0)
    # expansion=1 and upsample=None => residual add requires in_planes == out_planes
    N, C, H, W = 2, 32, 8, 8
    in_planes = out_planes = C

    keys = jax.random.split(key, 19)

    def u(k, shape, lo=-0.5, hi=0.5):
        return jax.random.uniform(k, shape, jnp.float32, lo, hi)

    params = dict(
        w1=u(keys[0], (in_planes, out_planes, 1, 1)),
        b1=u(keys[1], (out_planes,)),
        g1=u(keys[2], (out_planes,), 0.5, 1.5),
        be1=u(keys[3], (out_planes,)),
        m1=u(keys[4], (out_planes,)),
        v1=u(keys[5], (out_planes,), 0.5, 1.5),
        w2=u(keys[6], (out_planes, out_planes, 3, 3)),
        b2=u(keys[7], (out_planes,)),
        g2=u(keys[8], (out_planes,), 0.5, 1.5),
        be2=u(keys[9], (out_planes,)),
        m2=u(keys[10], (out_planes,)),
        v2=u(keys[11], (out_planes,), 0.5, 1.5),
        w3=u(keys[12], (out_planes, out_planes, 1, 1)),
        b3=u(keys[13], (out_planes,)),
        g3=u(keys[14], (out_planes,), 0.5, 1.5),
        be3=u(keys[15], (out_planes,)),
        m3=u(keys[16], (out_planes,)),
        v3=u(keys[17], (out_planes,), 0.5, 1.5),
    )
    x = u(keys[18], (N, C, H, W), -1.0, 1.0)

    out = bottleneck_block_transpose(x, params)
    out = jax.block_until_ready(out)

    ref = reference_forward(x, params)
    assert out.shape == ref.shape == (N, C, H, W)
    err = float(jnp.max(jnp.abs(out - ref)))
    assert jnp.allclose(out, ref, atol=1e-4, rtol=1e-4), f"max abs err = {err}"
    print("KERNEL_OK")
</pallas_src>

<mosaic_0001>
module attributes {stable_mosaic.version = 11 : i64} {
  func.func @_bottleneck_kernel(%arg0: i32, %arg1: memref<16x256xf32, #tpu.memory_space<vmem>>, %arg2: memref<256x256xf32, #tpu.memory_space<vmem>>, %arg3: memref<1x256xf32, #tpu.memory_space<vmem>>, %arg4: memref<16x16xf32, #tpu.memory_space<vmem>>, %arg5: memref<16x16xf32, #tpu.memory_space<vmem>>, %arg6: memref<256x256xf32, #tpu.memory_space<vmem>>, %arg7: memref<256x256xf32, #tpu.memory_space<vmem>>, %arg8: memref<256x256xf32, #tpu.memory_space<vmem>>, %arg9: memref<1x256xf32, #tpu.memory_space<vmem>>, %arg10: memref<256x256xf32, #tpu.memory_space<vmem>>, %arg11: memref<1x256xf32, #tpu.memory_space<vmem>>, %arg12: memref<16x256xf32, #tpu.memory_space<vmem>>) attributes {dimension_semantics = [#tpu.dimension_semantics<arbitrary>], iteration_bounds = array<i64: 1>, scalar_prefetch = 0 : i64, scratch_operands = 0 : i64, tpu.core_type = #tpu.core_type<tc>, window_params = [{pipeline_mode = #tpu.pipeline_mode<synchronous>, transform_indices = @transform_0, window_bounds = array<i64: 16, 256>}, {pipeline_mode = #tpu.pipeline_mode<synchronous>, transform_indices = @transform_1, window_bounds = array<i64: 256, 256>}, {pipeline_mode = #tpu.pipeline_mode<synchronous>, transform_indices = @transform_2, window_bounds = array<i64: 1, 256>}, {pipeline_mode = #tpu.pipeline_mode<synchronous>, transform_indices = @transform_3, window_bounds = array<i64: 16, 16>}, {pipeline_mode = #tpu.pipeline_mode<synchronous>, transform_indices = @transform_4, window_bounds = array<i64: 16, 16>}, {pipeline_mode = #tpu.pipeline_mode<synchronous>, transform_indices = @transform_5, window_bounds = array<i64: 256, 256>}, {pipeline_mode = #tpu.pipeline_mode<synchronous>, transform_indices = @transform_6, window_bounds = array<i64: 256, 256>}, {pipeline_mode = #tpu.pipeline_mode<synchronous>, transform_indices = @transform_7, window_bounds = array<i64: 256, 256>}, {pipeline_mode = #tpu.pipeline_mode<synchronous>, transform_indices = @transform_8, window_bounds = array<i64: 1, 256>}, {pipeline_mode = #tpu.pipeline_mode<synchronous>, transform_indices = @transform_9, window_bounds = array<i64: 256, 256>}, {pipeline_mode = #tpu.pipeline_mode<synchronous>, transform_indices = @transform_10, window_bounds = array<i64: 1, 256>}, {pipeline_mode = #tpu.pipeline_mode<synchronous>, transform_indices = @transform_11, window_bounds = array<i64: 16, 256>}]} {
    %c0 = arith.constant 0 : index
    %c0_0 = arith.constant 0 : index
    %0 = vector.load %arg1[%c0, %c0_0] : memref<16x256xf32, #tpu.memory_space<vmem>>, vector<16x256xf32>
    %c0_1 = arith.constant 0 : index
    %c0_2 = arith.constant 0 : index
    %1 = vector.load %arg2[%c0_1, %c0_2] : memref<256x256xf32, #tpu.memory_space<vmem>>, vector<256x256xf32>
    %cst = arith.constant dense<0.000000e+00> : vector<16x256xf32>
    %2 = tpu.matmul %0, %1, %cst {dimension_numbers = #tpu.dot_dimension_numbers<[1], [0], [0], [1], [0, 0, 1, 1], [], []>} : vector<16x256xf32>, vector<256x256xf32>, vector<16x256xf32> -> vector<16x256xf32>
    %c0_3 = arith.constant 0 : index
    %c0_4 = arith.constant 0 : index
    %3 = vector.load %arg3[%c0_3, %c0_4] : memref<1x256xf32, #tpu.memory_space<vmem>>, vector<1x256xf32>
    %4 = vector.broadcast %3 : vector<1x256xf32> to vector<16x256xf32>
    %5 = arith.addf %2, %4 : vector<16x256xf32>
    %cst_5 = arith.constant 0.000000e+00 : f32
    %6 = vector.broadcast %cst_5 : f32 to vector<16x256xf32>
    %7 = arith.maximumf %5, %6 : vector<16x256xf32>
    %c0_6 = arith.constant 0 : index
    %c0_7 = arith.constant 0 : index
    %8 = vector.load %arg4[%c0_6, %c0_7] : memref<16x16xf32, #tpu.memory_space<vmem>>, vector<16x16xf32>
    %cst_8 = arith.constant dense<0.000000e+00> : vector<16x256xf32>
    %9 = tpu.matmul %8, %7, %cst_8 {dimension_numbers = #tpu.dot_dimension_numbers<[1], [0], [0], [1], [0, 0, 1, 1], [], []>} : vector<16x16xf32>, vector<16x256xf32>, vector<16x256xf32> -> vector<16x256xf32>
    %c0_9 = arith.constant 0 : index
    %c0_10 = arith.constant 0 : index
    %10 = vector.load %arg5[%c0_9, %c0_10] : memref<16x16xf32, #tpu.memory_space<vmem>>, vector<16x16xf32>
    %cst_11 = arith.constant dense<0.000000e+00> : vector<16x256xf32>
    %11 = tpu.matmul %10, %7, %cst_11 {dimension_numbers = #tpu.dot_dimension_numbers<[1], [0], [0], [1], [0, 0, 1, 1], [], []>} : vector<16x16xf32>, vector<16x256xf32>, vector<16x256xf32> -> vector<16x256xf32>
    %c0_12 = arith.constant 0 : index
    %c0_13 = arith.constant 0 : index
    %12 = vector.load %arg6[%c0_12, %c0_13] : memref<256x256xf32, #tpu.memory_space<vmem>>, vector<256x256xf32>
    %cst_14 = arith.constant dense<0.000000e+00> : vector<16x256xf32>
    %13 = tpu.matmul %9, %12, %cst_14 {dimension_numbers = #tpu.dot_dimension_numbers<[1], [0], [0], [1], [0, 0, 1, 1], [], []>} : vector<16x256xf32>, vector<256x256xf32>, vector<16x256xf32> -> vector<16x256xf32>
    %c0_15 = arith.constant 0 : index
    %c0_16 = arith.constant 0 : index
    %14 = vector.load %arg7[%c0_15, %c0_16] : memref<256x256xf32, #tpu.memory_space<vmem>>, vector<256x256xf32>
    %cst_17 = arith.constant dense<0.000000e+00> : vector<16x256xf32>
    %15 = tpu.matmul %7, %14, %cst_17 {dimension_numbers = #tpu.dot_dimension_numbers<[1], [0], [0], [1], [0, 0, 1, 1], [], []>} : vector<16x256xf32>, vector<256x256xf32>, vector<16x256xf32> -> vector<16x256xf32>
    %16 = arith.addf %13, %15 : vector<16x256xf32>
    %c0_18 = arith.constant 0 : index
    %c0_19 = arith.constant 0 : index
    %17 = vector.load %arg8[%c0_18, %c0_19] : memref<256x256xf32, #tpu.memory_space<vmem>>, vector<256x256xf32>
    %cst_20 = arith.constant dense<0.000000e+00> : vector<16x256xf32>
    %18 = tpu.matmul %11, %17, %cst_20 {dimension_numbers = #tpu.dot_dimension_numbers<[1], [0], [0], [1], [0, 0, 1, 1], [], []>} : vector<16x256xf32>, vector<256x256xf32>, vector<16x256xf32> -> vector<16x256xf32>
    %19 = arith.addf %16, %18 : vector<16x256xf32>
    %c0_21 = arith.constant 0 : index
    %c0_22 = arith.constant 0 : index
    %20 = vector.load %arg9[%c0_21, %c0_22] : memref<1x256xf32, #tpu.memory_space<vmem>>, vector<1x256xf32>
    %21 = vector.broadcast %20 : vector<1x256xf32> to vector<16x256xf32>
    %22 = arith.addf %19, %21 : vector<16x256xf32>
    %cst_23 = arith.constant 0.000000e+00 : f32
    %23 = vector.broadcast %cst_23 : f32 to vector<16x256xf32>
    %24 = arith.maximumf %22, %23 : vector<16x256xf32>
    %c0_24 = arith.constant 0 : index
    %c0_25 = arith.constant 0 : index
    %25 = vector.load %arg10[%c0_24, %c0_25] : memref<256x256xf32, #tpu.memory_space<vmem>>, vector<256x256xf32>
    %cst_26 = arith.constant dense<0.000000e+00> : vector<16x256xf32>
    %26 = tpu.matmul %24, %25, %cst_26 {dimension_numbers = #tpu.dot_dimension_numbers<[1], [0], [0], [1], [0, 0, 1, 1], [], []>} : vector<16x256xf32>, vector<256x256xf32>, vector<16x256xf32> -> vector<16x256xf32>
    %c0_27 = arith.constant 0 : index
    %c0_28 = arith.constant 0 : index
    %27 = vector.load %arg11[%c0_27, %c0_28] : memref<1x256xf32, #tpu.memory_space<vmem>>, vector<1x256xf32>
    %28 = vector.broadcast %27 : vector<1x256xf32> to vector<16x256xf32>
    %29 = arith.addf %26, %28 : vector<16x256xf32>
    %30 = arith.addf %29, %0 : vector<16x256xf32>
    %cst_29 = arith.constant 0.000000e+00 : f32
    %31 = vector.broadcast %cst_29 : f32 to vector<16x256xf32>
    %32 = arith.maximumf %30, %31 : vector<16x256xf32>
    %c0_30 = arith.constant 0 : index
    %c0_31 = arith.constant 0 : index
    %33 = vector.load %arg12[%c0_30, %c0_31] : memref<16x256xf32, #tpu.memory_space<vmem>>, vector<16x256xf32>
    tpu.vector_store %arg12[%c0_30, %c0_31], %32 {strides = array<i32>} : memref<16x256xf32, #tpu.memory_space<vmem>>, vector<16x256xf32>,
    return
  }
  func.func @transform_0(%arg0: i32) -> (i32, i32) {
    %c0_i32 = arith.constant 0 : i32
    %c0_i32_0 = arith.constant 0 : i32
    %c0_i32_1 = arith.constant 0 : i32
    return %c0_i32, %c0_i32_0 : i32, i32
  }
  func.func @transform_1(%arg0: i32) -> (i32, i32) {
    %c0_i32 = arith.constant 0 : i32
    %c0_i32_0 = arith.constant 0 : i32
    %c0_i32_1 = arith.constant 0 : i32
    return %c0_i32, %c0_i32_0 : i32, i32
  }
  func.func @transform_2(%arg0: i32) -> (i32, i32) {
    %c0_i32 = arith.constant 0 : i32
    %c0_i32_0 = arith.constant 0 : i32
    %c0_i32_1 = arith.constant 0 : i32
    return %c0_i32, %c0_i32_0 : i32, i32
  }
  func.func @transform_3(%arg0: i32) -> (i32, i32) {
    %c0_i32 = arith.constant 0 : i32
    %c0_i32_0 = arith.constant 0 : i32
    %c0_i32_1 = arith.constant 0 : i32
    return %c0_i32, %c0_i32_0 : i32, i32
  }
  func.func @transform_4(%arg0: i32) -> (i32, i32) {
    %c0_i32 = arith.constant 0 : i32
    %c0_i32_0 = arith.constant 0 : i32
    %c0_i32_1 = arith.constant 0 : i32
    return %c0_i32, %c0_i32_0 : i32, i32
  }
  func.func @transform_5(%arg0: i32) -> (i32, i32) {
    %c0_i32 = arith.constant 0 : i32
    %c0_i32_0 = arith.constant 0 : i32
    %c0_i32_1 = arith.constant 0 : i32
    return %c0_i32, %c0_i32_0 : i32, i32
  }
  func.func @transform_6(%arg0: i32) -> (i32, i32) {
    %c0_i32 = arith.constant 0 : i32
    %c0_i32_0 = arith.constant 0 : i32
    %c0_i32_1 = arith.constant 0 : i32
    return %c0_i32, %c0_i32_0 : i32, i32
  }
  func.func @transform_7(%arg0: i32) -> (i32, i32) {
    %c0_i32 = arith.constant 0 : i32
    %c0_i32_0 = arith.constant 0 : i32
    %c0_i32_1 = arith.constant 0 : i32
    return %c0_i32, %c0_i32_0 : i32, i32
  }
  func.func @transform_8(%arg0: i32) -> (i32, i32) {
    %c0_i32 = arith.constant 0 : i32
    %c0_i32_0 = arith.constant 0 : i32
    %c0_i32_1 = arith.constant 0 : i32
    return %c0_i32, %c0_i32_0 : i32, i32
  }
  func.func @transform_9(%arg0: i32) -> (i32, i32) {
    %c0_i32 = arith.constant 0 : i32
    %c0_i32_0 = arith.constant 0 : i32
    %c0_i32_1 = arith.constant 0 : i32
    return %c0_i32, %c0_i32_0 : i32, i32
  }
  func.func @transform_10(%arg0: i32) -> (i32, i32) {
    %c0_i32 = arith.constant 0 : i32
    %c0_i32_0 = arith.constant 0 : i32
    %c0_i32_1 = arith.constant 0 : i32
    return %c0_i32, %c0_i32_0 : i32, i32
  }
  func.func @transform_11(%arg0: i32) -> (i32, i32) {
    %c0_i32 = arith.constant 0 : i32
    %c0_i32_0 = arith.constant 0 : i32
    %c0_i32_1 = arith.constant 0 : i32
    return %c0_i32, %c0_i32_0 : i32, i32
  }
}

</mosaic_0001>

<llo_original>
// kernel: tpu_custom_call.1
$region0: #{tpu_custom_call.1}
  #allocation0 [shape = 'u32[]', space=smem, size = 0x4, offset = 0x4, fixed_abs, tag = 'smem constant byte address 0x4 - core index']
  #allocation1 [shape = 'u32[144,128]{1,0:T(1,128)}', space=vmem, size = 0x12000, scoped, tag = 'internal scratch']
  %s0 = inlined_call_operand.hbm [shape: f32[16,256], index: 0, kind: input, shape index: {}]
  %s1 = inlined_call_operand.hbm [shape: f32[256,256], index: 1, kind: input, shape index: {}]
  %s2 = inlined_call_operand.vmem [shape: f32[1,256], index: 2, kind: input, shape index: {}]
  %s3 = inlined_call_operand.hbm [shape: f32[16,16], index: 3, kind: input, shape index: {}]
  %s4 = inlined_call_operand.hbm [shape: f32[16,16], index: 4, kind: input, shape index: {}]
  %s5 = inlined_call_operand.hbm [shape: f32[256,256], index: 5, kind: input, shape index: {}]
  %s6 = inlined_call_operand.hbm [shape: f32[256,256], index: 6, kind: input, shape index: {}]
  %s7 = inlined_call_operand.hbm [shape: f32[256,256], index: 7, kind: input, shape index: {}]
  %s8 = inlined_call_operand.vmem [shape: f32[1,256], index: 8, kind: input, shape index: {}]
  %s9 = inlined_call_operand.hbm [shape: f32[256,256], index: 9, kind: input, shape index: {}]
  %s10 = inlined_call_operand.vmem [shape: f32[1,256], index: 10, kind: input, shape index: {}]
  %s11 = inlined_call_operand.hbm [shape: f32[16,256], index: 11, kind: output, shape index: {}]
  %s12 = sld [smem:[#allocation0]]
  $region86: #{tpu_custom_call.1} parent=0
    _
  %s14 = ssub.s32 1, %s12
  %s15 = scalar_select 0, %s14, %s12
  $region1: #{tpu_custom_call.1} parent=0
    #allocation2 [shape = 'u8[16384]{0}', space=vmem, size = 0x4000, scoped, tag = 'input window, operand 0, single buffered']
    #allocation3 [shape = 's32[1]{0}', space=sflag, size = 0x4, scoped, tag = 'scoped memory for tpu_custom_call.1']
    #allocation4 [shape = 's32[1]{0}', space=sflag, size = 0x4, scoped, tag = 'scoped memory for tpu_custom_call.1']
    #allocation5 [shape = 'u8[262144]{0}', space=vmem, size = 0x40000, scoped, tag = 'input window, operand 1, single buffered']
    #allocation6 [shape = 's32[1]{0}', space=sflag, size = 0x4, scoped, tag = 'scoped memory for tpu_custom_call.1']
    #allocation7 [shape = 'u8[8192]{0}', space=vmem, size = 0x2000, scoped, tag = 'input window, operand 3, single buffered']
    #allocation8 [shape = 'u8[8192]{0}', space=vmem, size = 0x2000, scoped, tag = 'input window, operand 4, single buffered']
    #allocation9 [shape = 's32[1]{0}', space=sflag, size = 0x4, scoped, tag = 'scoped memory for tpu_custom_call.1']
    #allocation10 [shape = 'u8[262144]{0}', space=vmem, size = 0x40000, scoped, tag = 'input window, operand 5, single buffered']
    #allocation11 [shape = 'u8[262144]{0}', space=vmem, size = 0x40000, scoped, tag = 'input window, operand 6, single buffered']
    #allocation12 [shape = 's32[1]{0}', space=sflag, size = 0x4, scoped, tag = 'scoped memory for tpu_custom_call.1']
    #allocation13 [shape = 'u8[262144]{0}', space=vmem, size = 0x40000, scoped, tag = 'input window, operand 7, single buffered']
    #allocation14 [shape = 'u8[262144]{0}', space=vmem, size = 0x40000, scoped, tag = 'input window, operand 9, single buffered']
    #allocation15 [shape = 's32[1]{0}', space=sflag, size = 0x4, scoped, tag = 'scoped memory for tpu_custom_call.1']
    #allocation16 [shape = 'u8[16384]{0}', space=vmem, size = 0x4000, scoped, tag = 'output window, operand 0, single buffered']
    %16 = vsyncpa [#allocation3], 0
    %17 = vsyncpa [#allocation6], 0
    %18 = vsyncpa [#allocation9], 0
    %19 = vsyncpa [#allocation12], 0
    %20 = vsyncpa [#allocation15], 0
    %21 = vsyncpa [#allocation4], 0
    // Predicated region
    $region2: #{tpu_custom_call.1} parent=1 // pred_check
      _
    $region3: #{tpu_custom_call.1} parent=1 // pred_check_branch
      %23 = sbr.rel (0) target = $region5
    $region4: #{tpu_custom_call.1} parent=1 // pred_region
      %s25 = ssub.s32 512, 512
      %26 = vsyncadd [#allocation3], %s25
      %s27 = sshll.u32 [#allocation2], 4
      %s28 = int_to_ptr.vmem [resolvable:$true] %s27
      %33 = dma.hbm_to_vmem [thread:$0]  %s0, 512, %s28, [#allocation3], 256, 256, 16
    $region5: #{tpu_custom_call.1} parent=1 // pred_fallthru
      _
    // Predicated region
    $region6: #{tpu_custom_call.1} parent=1 // pred_check
      _
    $region7: #{tpu_custom_call.1} parent=1 // pred_check_branch
      %35 = sbr.rel (0) target = $region9
    $region8: #{tpu_custom_call.1} parent=1 // pred_region
      %s37 = ssub.s32 8192, 8192
      %38 = vsyncadd [#allocation6], %s37
      %s39 = sshll.u32 [#allocation5], 4
      %s40 = int_to_ptr.vmem [resolvable:$true] %s39
      %45 = dma.hbm_to_vmem [thread:$0]  %s1, 8192, %s40, [#allocation6], 256, 256, 16
    $region9: #{tpu_custom_call.1} parent=1 // pred_fallthru
      _
    // Predicated region
    $region10: #{tpu_custom_call.1} parent=1 // pred_check
      _
    $region11: #{tpu_custom_call.1} parent=1 // pred_check_branch
      %47 = sbr.rel (0) target = $region13
    $region12: #{tpu_custom_call.1} parent=1 // pred_region
      _
    $region13: #{tpu_custom_call.1} parent=1 // pred_fallthru
      _
    // Predicated region
    $region14: #{tpu_custom_call.1} parent=1 // pred_check
      _
    $region15: #{tpu_custom_call.1} parent=1 // pred_check_branch
      %49 = sbr.rel (0) target = $region17
    $region16: #{tpu_custom_call.1} parent=1 // pred_region
      %s51 = ssub.s32 256, 256
      %52 = vsyncadd [#allocation6], %s51
      %s53 = sshll.u32 [#allocation7], 4
      %s54 = int_to_ptr.vmem [resolvable:$true] %s53
      %59 = dma.hbm_to_vmem [thread:$0]  %s3, 256, %s54, [#allocation6], 128, 128, 8
    $region17: #{tpu_custom_call.1} parent=1 // pred_fallthru
      _
    // Predicated region
    $region18: #{tpu_custom_call.1} parent=1 // pred_check
      _
    $region19: #{tpu_custom_call.1} parent=1 // pred_check_branch
      %61 = sbr.rel (0) target = $region21
    $region20: #{tpu_custom_call.1} parent=1 // pred_region
      %s63 = ssub.s32 256, 256
      %64 = vsyncadd [#allocation9], %s63
      %s65 = sshll.u32 [#allocation8], 4
      %s66 = int_to_ptr.vmem [resolvable:$true] %s65
      %71 = dma.hbm_to_vmem [thread:$0]  %s4, 256, %s66, [#allocation9], 128, 128, 8
    $region21: #{tpu_custom_call.1} parent=1 // pred_fallthru
      _
    // Predicated region
    $region22: #{tpu_custom_call.1} parent=1 // pred_check
      _
    $region23: #{tpu_custom_call.1} parent=1 // pred_check_branch
      %73 = sbr.rel (0) target = $region25
    $region24: #{tpu_custom_call.1} parent=1 // pred_region
      %s75 = ssub.s32 8192, 8192
      %76 = vsyncadd [#allocation9], %s75
      %s77 = sshll.u32 [#allocation10], 4
      %s78 = int_to_ptr.vmem [resolvable:$true] %s77
      %83 = dma.hbm_to_vmem [thread:$0]  %s5, 8192, %s78, [#allocation9], 256, 256, 16
    $region25: #{tpu_custom_call.1} parent=1 // pred_fallthru
      _
    // Predicated region
    $region26: #{tpu_custom_call.1} parent=1 // pred_check
      _
    $region27: #{tpu_custom_call.1} parent=1 // pred_check_branch
      %85 = sbr.rel (0) target = $region29
    $region28: #{tpu_custom_call.1} parent=1 // pred_region
      %s87 = ssub.s32 8192, 8192
      %88 = vsyncadd [#allocation12], %s87
      %s89 = sshll.u32 [#allocation11], 4
      %s90 = int_to_ptr.vmem [resolvable:$true] %s89
      %95 = dma.hbm_to_vmem [thread:$0]  %s6, 8192, %s90, [#allocation12], 256, 256, 16
    $region29: #{tpu_custom_call.1} parent=1 // pred_fallthru
      _
    // Predicated region
    $region30: #{tpu_custom_call.1} parent=1 // pred_check
      _
    $region31: #{tpu_custom_call.1} parent=1 // pred_check_branch
      %97 = sbr.rel (0) target = $region33
    $region32: #{tpu_custom_call.1} parent=1 // pred_region
      %s99 = ssub.s32 8192, 8192
      %100 = vsyncadd [#allocation12], %s99
      %s101 = sshll.u32 [#allocation13], 4
      %s102 = int_to_ptr.vmem [resolvable:$true] %s101
      %107 = dma.hbm_to_vmem [thread:$0]  %s7, 8192, %s102, [#allocation12], 256, 256, 16
    $region33: #{tpu_custom_call.1} parent=1 // pred_fallthru
      _
    // Predicated region
    $region34: #{tpu_custom_call.1} parent=1 // pred_check
      _
    $region35: #{tpu_custom_call.1} parent=1 // pred_check_branch
      %109 = sbr.rel (0) target = $region37
    $region36: #{tpu_custom_call.1} parent=1 // pred_region
      _
    $region37: #{tpu_custom_call.1} parent=1 // pred_fallthru
      _
    // Predicated region
    $region38: #{tpu_custom_call.1} parent=1 // pred_check
      _
    $region39: #{tpu_custom_call.1} parent=1 // pred_check_branch
      %111 = sbr.rel (0) target = $region41
    $region40: #{tpu_custom_call.1} parent=1 // pred_region
      %s113 = ssub.s32 8192, 8192
      %114 = vsyncadd [#allocation15], %s113
      %s115 = sshll.u32 [#allocation14], 4
      %s116 = int_to_ptr.vmem [resolvable:$true] %s115
      %121 = dma.hbm_to_vmem [thread:$0]  %s9, 8192, %s116, [#allocation15], 256, 256, 16
    $region41: #{tpu_custom_call.1} parent=1 // pred_fallthru
      _
    // Predicated region
    $region42: #{tpu_custom_call.1} parent=1 // pred_check
      _
    $region43: #{tpu_custom_call.1} parent=1 // pred_check_branch
      %123 = sbr.rel (0) target = $region45
    $region44: #{tpu_custom_call.1} parent=1 // pred_region
      _
    $region45: #{tpu_custom_call.1} parent=1 // pred_fallthru
      _
    // Predicated region
    $region46: #{tpu_custom_call.1} parent=1 // pred_check
      _
    $region47: #{tpu_custom_call.1} parent=1 // pred_check_branch
      %125 = sbr.rel (0) target = $region49
    $region48: #{tpu_custom_call.1} parent=1 // pred_region
      %126 = dma.done [#allocation3], 512
    $region49: #{tpu_custom_call.1} parent=1 // pred_fallthru
      _
    // Predicated region
    $region50: #{tpu_custom_call.1} parent=1 // pred_check
      _
    $region51: #{tpu_custom_call.1} parent=1 // pred_check_branch
      %128 = sbr.rel (0) target = $region53
    $region52: #{tpu_custom_call.1} parent=1 // pred_region
      %129 = dma.done [#allocation6], 8192
    $region53: #{tpu_custom_call.1} parent=1 // pred_fallthru
      _
    // Predicated region
    $region54: #{tpu_custom_call.1} parent=1 // pred_check
      _
    $region55: #{tpu_custom_call.1} parent=1 // pred_check_branch
      %131 = sbr.rel (0) target = $region57
    $region56: #{tpu_custom_call.1} parent=1 // pred_region
      %132 = dma.done [#allocation6], 256
    $region57: #{tpu_custom_call.1} parent=1 // pred_fallthru
      _
    // Predicated region
    $region58: #{tpu_custom_call.1} parent=1 // pred_check
      _
    $region59: #{tpu_custom_call.1} parent=1 // pred_check_branch
      %134 = sbr.rel (0) target = $region61
    $region60: #{tpu_custom_call.1} parent=1 // pred_region
      %135 = dma.done [#allocation9], 256
    $region61: #{tpu_custom_call.1} parent=1 // pred_fallthru
      _
    // Predicated region
    $region62: #{tpu_custom_call.1} parent=1 // pred_check
      _
    $region63: #{tpu_custom_call.1} parent=1 // pred_check_branch
      %137 = sbr.rel (0) target = $region65
    $region64: #{tpu_custom_call.1} parent=1 // pred_region
      %138 = dma.done [#allocation9], 8192
    $region65: #{tpu_custom_call.1} parent=1 // pred_fallthru
      _
    // Predicated region
    $region66: #{tpu_custom_call.1} parent=1 // pred_check
      _
    $region67: #{tpu_custom_call.1} parent=1 // pred_check_branch
      %140 = sbr.rel (0) target = $region69
    $region68: #{tpu_custom_call.1} parent=1 // pred_region
      %141 = dma.done [#allocation12], 8192
    $region69: #{tpu_custom_call.1} parent=1 // pred_fallthru
      _
    // Predicated region
    $region70: #{tpu_custom_call.1} parent=1 // pred_check
      _
    $region71: #{tpu_custom_call.1} parent=1 // pred_check_branch
      %143 = sbr.rel (0) target = $region73
    $region72: #{tpu_custom_call.1} parent=1 // pred_region
      %144 = dma.done [#allocation12], 8192
    $region73: #{tpu_custom_call.1} parent=1 // pred_fallthru
      _
    // Predicated region
    $region74: #{tpu_custom_call.1} parent=1 // pred_check
      _
    $region75: #{tpu_custom_call.1} parent=1 // pred_check_branch
      %146 = sbr.rel (0) target = $region77
    $region76: #{tpu_custom_call.1} parent=1 // pred_region
      %147 = dma.done [#allocation15], 8192
    $region77: #{tpu_custom_call.1} parent=1 // pred_fallthru
      _
    %v148 = vld [vmem:[#allocation2] sm:$0xff]
    %v149 = vld [vmem:[#allocation2 + $0x8] sm:$0xff]
    %v150 = vld [vmem:[#allocation2 + $0x10] sm:$0xff]
    %v151 = vld [vmem:[#allocation2 + $0x18] sm:$0xff]
    %v152 = vld [vmem:[#allocation5] sm:$0xff]
    %v153 = vld [vmem:[#allocation5 + $0x8] sm:$0xff]
    %v154 = vld [vmem:[#allocation5 + $0x10] sm:$0xff]
    %v155 = vld [vmem:[#allocation5 + $0x18] sm:$0xff]
    %v156 = vld [vmem:[#allocation5 + $0x20] sm:$0xff]
    %v157 = vld [vmem:[#allocation5 + $0x28] sm:$0xff]
    %v158 = vld [vmem:[#allocation5 + $0x30] sm:$0xff]
    %v159 = vld [vmem:[#allocation5 + $0x38] sm:$0xff]
    %v160 = vld [vmem:[#allocation5 + $0x40] sm:$0xff]
    %v161 = vld [vmem:[#allocation5 + $0x48] sm:$0xff]
    %v162 = vld [vmem:[#allocation5 + $0x50] sm:$0xff]
    %v163 = vld [vmem:[#allocation5 + $0x58] sm:$0xff]
    %v164 = vld [vmem:[#allocation5 + $0x60] sm:$0xff]
    %v165 = vld [vmem:[#allocation5 + $0x68] sm:$0xff]
    %v166 = vld [vmem:[#allocation5 + $0x70] sm:$0xff]
    %v167 = vld [vmem:[#allocation5 + $0x78] sm:$0xff]
    %v168 = vld [vmem:[#allocation5 + $0x80] sm:$0xff]
    %v169 = vld [vmem:[#allocation5 + $0x88] sm:$0xff]
    %v170 = vld [vmem:[#allocation5 + $0x90] sm:$0xff]
    %v171 = vld [vmem:[#allocation5 + $0x98] sm:$0xff]
    %v172 = vld [vmem:[#allocation5 + $0xa0] sm:$0xff]
    %v173 = vld [vmem:[#allocation5 + $0xa8] sm:$0xff]
    %v174 = vld [vmem:[#allocation5 + $0xb0] sm:$0xff]
    %v175 = vld [vmem:[#allocation5 + $0xb8] sm:$0xff]
    %v176 = vld [vmem:[#allocation5 + $0xc0] sm:$0xff]
    %v177 = vld [vmem:[#allocation5 + $0xc8] sm:$0xff]
    %v178 = vld [vmem:[#allocation5 + $0xd0] sm:$0xff]
    %v179 = vld [vmem:[#allocation5 + $0xd8] sm:$0xff]
    %v180 = vld [vmem:[#allocation5 + $0xe0] sm:$0xff]
    %v181 = vld [vmem:[#allocation5 + $0xe8] sm:$0xff]
    %v182 = vld [vmem:[#allocation5 + $0xf0] sm:$0xff]
    %v183 = vld [vmem:[#allocation5 + $0xf8] sm:$0xff]
    %v184 = vld [vmem:[#allocation5 + $0x100] sm:$0xff]
    %v185 = vld [vmem:[#allocation5 + $0x108] sm:$0xff]
    %v186 = vld [vmem:[#allocation5 + $0x110] sm:$0xff]
    %v187 = vld [vmem:[#allocation5 + $0x118] sm:$0xff]
    %v188 = vld [vmem:[#allocation5 + $0x120] sm:$0xff]
    %v189 = vld [vmem:[#allocation5 + $0x128] sm:$0xff]
    %v190 = vld [vmem:[#allocation5 + $0x130] sm:$0xff]
    %v191 = vld [vmem:[#allocation5 + $0x138] sm:$0xff]
    %v192 = vld [vmem:[#allocation5 + $0x140] sm:$0xff]
    %v193 = vld [vmem:[#allocation5 + $0x148] sm:$0xff]
    %v194 = vld [vmem:[#allocation5 + $0x150] sm:$0xff]
    %v195 = vld [vmem:[#allocation5 + $0x158] sm:$0xff]
    %v196 = vld [vmem:[#allocation5 + $0x160] sm:$0xff]
    %v197 = vld [vmem:[#allocation5 + $0x168] sm:$0xff]
    %v198 = vld [vmem:[#allocation5 + $0x170] sm:$0xff]
    %v199 = vld [vmem:[#allocation5 + $0x178] sm:$0xff]
    %v200 = vld [vmem:[#allocation5 + $0x180] sm:$0xff]
    %v201 = vld [vmem:[#allocation5 + $0x188] sm:$0xff]
    %v202 = vld [vmem:[#allocation5 + $0x190] sm:$0xff]
    %v203 = vld [vmem:[#allocation5 + $0x198] sm:$0xff]
    %v204 = vld [vmem:[#allocation5 + $0x1a0] sm:$0xff]
    %v205 = vld [vmem:[#allocation5 + $0x1a8] sm:$0xff]
    %v206 = vld [vmem:[#allocation5 + $0x1b0] sm:$0xff]
    %v207 = vld [vmem:[#allocation5 + $0x1b8] sm:$0xff]
    %v208 = vld [vmem:[#allocation5 + $0x1c0] sm:$0xff]
    %v209 = vld [vmem:[#allocation5 + $0x1c8] sm:$0xff]
    %v210 = vld [vmem:[#allocation5 + $0x1d0] sm:$0xff]
    %v211 = vld [vmem:[#allocation5 + $0x1d8] sm:$0xff]
    %v212 = vld [vmem:[#allocation5 + $0x1e0] sm:$0xff]
    %v213 = vld [vmem:[#allocation5 + $0x1e8] sm:$0xff]
    %v214 = vld [vmem:[#allocation5 + $0x1f0] sm:$0xff]
    %v215 = vld [vmem:[#allocation5 + $0x1f8] sm:$0xff]
    %v216 = vld [vmem:[%s2] sm:$0x3]
    %v218 = vlaneseq
    %v219 = vshrl.u32 %v218, 7
    %v220 = vsub.s32 0, %v219
    %v221 = vrot.slane %v216, %v220
    %v222 = vlaneseq
    %v223 = vshrl.u32 %v222, 7
    %v224 = vsub.s32 1, %v223
    %v225 = vrot.slane %v216, %v224
    %228 = vmatprep.subr.mxu0 %v183
    %229 = vmatpush1.msra.mxu0 %v182
    %230 = vmatprep.subr.mxu0 %v181
    %231 = vmatpush1.msra.mxu0 %v180
    %232 = vmatprep.subr.mxu0 %v179
    %233 = vmatpush1.msra.mxu0 %v178
    %234 = vmatprep.subr.mxu0 %v177
    %235 = vmatpush1.msra.mxu0 %v176
    %236 = vmatprep.subr.mxu0 %v175
    %237 = vmatpush1.msra.mxu0 %v174
    %238 = vmatprep.subr.mxu0 %v173
    %239 = vmatpush1.msra.mxu0 %v172
    %240 = vmatprep.subr.mxu0 %v171
    %241 = vmatpush1.msra.mxu0 %v170
    %242 = vmatprep.subr.mxu0 %v169
    %243 = vmatpush1.msra.mxu0 %v168
    %244 = vmatprep.subr.mxu0 %v167
    %245 = vmatpush1.msra.mxu0 %v166
    %246 = vmatprep.subr.mxu0 %v165
    %247 = vmatpush1.msra.mxu0 %v164
    %248 = vmatprep.subr.mxu0 %v163
    %249 = vmatpush1.msra.mxu0 %v162
    %250 = vmatprep.subr.mxu0 %v161
    %251 = vmatpush1.msra.mxu0 %v160
    %252 = vmatprep.subr.mxu0 %v159
    %253 = vmatpush1.msra.mxu0 %v158
    %254 = vmatprep.subr.mxu0 %v157
    %255 = vmatpush1.msra.mxu0 %v156
    %256 = vmatprep.subr.mxu0 %v155
    %257 = vmatpush1.msra.mxu0 %v154
    %258 = vmatprep.subr.mxu0 %v153
    %259 = vmatpush1.msra.mxu0 %v152
    %260 = vmatprep.subr.mxu0 %v215
    %261 = vmatpush2.msra.mxu0 %v214
    %262 = vmatprep.subr.mxu0 %v213
    %263 = vmatpush2.msra.mxu0 %v212
    %264 = vmatprep.subr.mxu0 %v211
    %265 = vmatpush2.msra.mxu0 %v210
    %266 = vmatprep.subr.mxu0 %v209
    %267 = vmatpush2.msra.mxu0 %v208
    %268 = vmatprep.subr.mxu0 %v207
    %269 = vmatpush2.msra.mxu0 %v206
    %270 = vmatprep.subr.mxu0 %v205
    %271 = vmatpush2.msra.mxu0 %v204
    %272 = vmatprep.subr.mxu0 %v203
    %273 = vmatpush2.msra.mxu0 %v202
    %274 = vmatprep.subr.mxu0 %v201
    %275 = vmatpush2.msra.mxu0 %v200
    %276 = vmatprep.subr.mxu0 %v199
    %277 = vmatpush2.msra.mxu0 %v198
    %278 = vmatprep.subr.mxu0 %v197
    %279 = vmatpush2.msra.mxu0 %v196
    %280 = vmatprep.subr.mxu0 %v195
    %281 = vmatpush2.msra.mxu0 %v194
    %282 = vmatprep.subr.mxu0 %v193
    %283 = vmatpush2.msra.mxu0 %v192
    %284 = vmatprep.subr.mxu0 %v191
    %285 = vmatpush2.msra.mxu0 %v190
    %286 = vmatprep.subr.mxu0 %v189
    %287 = vmatpush2.msra.mxu0 %v188
    %288 = vmatprep.subr.mxu0 %v187
    %289 = vmatpush2.msra.mxu0 %v186
    %290 = vmatprep.subr.mxu0 %v185
    %291 = vmatpush2.msra.mxu0 %v184
    %292 = vmatprep.mubr.f32.mxu0 %v149
    %293 = vmatmul.mubr.f32.gmra.mxu0 %v148
    %v294 = vpop.f32.mrf.mxu0
    %v295 = vadd.f32 %v221, %v294
    %v296 = vpop.f32.mrf.mxu0
    %v297 = vadd.f32 %v225, %v296
    %298 = vmatprep.mubr.f32.mxu0 %v151
    %299 = vmatmul.mubr.f32.gmra.mxu0 %v150
    %v300 = vpop.f32.mrf.mxu0
    %v301 = vadd.f32 %v221, %v300
    %v302 = vpop.f32.mrf.mxu0
    %v303 = vadd.f32 %v225, %v302
    %304 = vdwg.mxu0
    %v305 = vmax.f32 %v295, 0.0
    %v306 = vmax.f32 %v297, 0.0
    %v307 = vmax.f32 %v301, 0.0
    %v308 = vmax.f32 %v303, 0.0
    %v309 = vld [vmem:[#allocation7] sm:$0xff]
    %v310 = vld [vmem:[#allocation7 + $0x8] sm:$0xff]
    %vm311 = vcmask 130048
    %v313 = vsel %vm311, %v309, 0
    %v316 = vsel %vm311, %v310, 0
    %318 = vmatprep.subr.mxu0 0.0
    %319 = vmatpush1.msra.mxu0 0.0
    %320 = vmatprep.subr.mxu0 0.0
    %321 = vmatpush1.msra.mxu0 0.0
    %322 = vmatprep.subr.mxu0 0.0
    %323 = vmatpush1.msra.mxu0 0.0
    %324 = vmatprep.subr.mxu0 0.0
    %325 = vmatpush1.msra.mxu0 0.0
    %326 = vmatprep.subr.mxu0 0.0
    %327 = vmatpush1.msra.mxu0 0.0
    %328 = vmatprep.subr.mxu0 0.0
    %329 = vmatpush1.msra.mxu0 0.0
    %330 = vmatprep.subr.mxu0 0.0
    %331 = vmatpush1.msra.mxu0 0.0
    %332 = vmatprep.subr.mxu0 0.0
    %333 = vmatpush1.msra.mxu0 0.0
    %334 = vmatprep.subr.mxu0 0.0
    %335 = vmatpush1.msra.mxu0 0.0
    %336 = vmatprep.subr.mxu0 0.0
    %337 = vmatpush1.msra.mxu0 0.0
    %338 = vmatprep.subr.mxu0 0.0
    %339 = vmatpush1.msra.mxu0 0.0
    %340 = vmatprep.subr.mxu0 0.0
    %341 = vmatpush1.msra.mxu0 0.0
    %342 = vmatprep.subr.mxu0 0.0
    %343 = vmatpush1.msra.mxu0 0.0
    %344 = vmatprep.subr.mxu0 0.0
    %345 = vmatpush1.msra.mxu0 0.0
    %346 = vmatprep.subr.mxu0 %v308
    %347 = vmatpush1.msra.mxu0 %v307
    %348 = vmatprep.subr.mxu0 %v306
    %349 = vmatpush1.msra.mxu0 %v305
    %350 = vmatprep.subr.mxu0 0.0
    %351 = vmatpush2.msra.mxu0 0.0
    %352 = vmatprep.subr.mxu0 0.0
    %353 = vmatpush2.msra.mxu0 0.0
    %354 = vmatprep.subr.mxu0 0.0
    %355 = vmatpush2.msra.mxu0 0.0
    %356 = vmatprep.subr.mxu0 0.0
    %357 = vmatpush2.msra.mxu0 0.0
    %358 = vmatprep.subr.mxu0 0.0
    %359 = vmatpush2.msra.mxu0 0.0
    %360 = vmatprep.subr.mxu0 0.0
    %361 = vmatpush2.msra.mxu0 0.0
    %362 = vmatprep.subr.mxu0 0.0
    %363 = vmatpush2.msra.mxu0 0.0
    %364 = vmatprep.subr.mxu0 0.0
    %365 = vmatpush2.msra.mxu0 0.0
    %366 = vmatprep.subr.mxu0 0.0
    %367 = vmatpush2.msra.mxu0 0.0
    %368 = vmatprep.subr.mxu0 0.0
    %369 = vmatpush2.msra.mxu0 0.0
    %370 = vmatprep.subr.mxu0 0.0
    %371 = vmatpush2.msra.mxu0 0.0
    %372 = vmatprep.subr.mxu0 0.0
    %373 = vmatpush2.msra.mxu0 0.0
    %374 = vmatprep.subr.mxu0 0.0
    %375 = vmatpush2.msra.mxu0 0.0
    %376 = vmatprep.subr.mxu0 0.0
    %377 = vmatpush2.msra.mxu0 0.0
    %378 = vmatprep.subr.mxu0 0.0
    %379 = vmatpush2.msra.mxu0 0.0
    %380 = vmatprep.subr.mxu0 0.0
    %381 = vmatpush2.msra.mxu0 0.0
    %382 = vmatprep.mubr.f32.mxu0 0.0
    %383 = vmatmul.mubr.f32.gmra.mxu0 %v313
    %v384 = vpop.f32.mrf.mxu0
    %v385 = vadd.f32 0.0, %v384
    %v386 = vpop.f32.mrf.mxu0
    %v387 = vadd.f32 0.0, %v386
    %388 = vmatprep.mubr.f32.mxu0 0.0
    %389 = vmatmul.mubr.f32.gmra.mxu0 %v316
    %v390 = vpop.f32.mrf.mxu0
    %v391 = vadd.f32 0.0, %v390
    %v392 = vpop.f32.mrf.mxu0
    %v393 = vadd.f32 0.0, %v392
    %394 = vdwg.mxu0
    %v395 = vld [vmem:[#allocation8] sm:$0xff]
    %v396 = vld [vmem:[#allocation8 + $0x8] sm:$0xff]
    %v398 = vsel %vm311, %v395, 0
    %v401 = vsel %vm311, %v396, 0
    %403 = vmatprep.subr.mxu0 0.0
    %404 = vmatpush1.msra.mxu0 0.0
    %405 = vmatprep.subr.mxu0 0.0
    %406 = vmatpush1.msra.mxu0 0.0
    %407 = vmatprep.subr.mxu0 0.0
    %408 = vmatpush1.msra.mxu0 0.0
    %409 = vmatprep.subr.mxu0 0.0
    %410 = vmatpush1.msra.mxu0 0.0
    %411 = vmatprep.subr.mxu0 0.0
    %412 = vmatpush1.msra.mxu0 0.0
    %413 = vmatprep.subr.mxu0 0.0
    %414 = vmatpush1.msra.mxu0 0.0
    %415 = vmatprep.subr.mxu0 0.0
    %416 = vmatpush1.msra.mxu0 0.0
    %417 = vmatprep.subr.mxu0 0.0
    %418 = vmatpush1.msra.mxu0 0.0
    %419 = vmatprep.subr.mxu0 0.0
    %420 = vmatpush1.msra.mxu0 0.0
    %421 = vmatprep.subr.mxu0 0.0
    %422 = vmatpush1.msra.mxu0 0.0
    %423 = vmatprep.subr.mxu0 0.0
    %424 = vmatpush1.msra.mxu0 0.0
    %425 = vmatprep.subr.mxu0 0.0
    %426 = vmatpush1.msra.mxu0 0.0
    %427 = vmatprep.subr.mxu0 0.0
    %428 = vmatpush1.msra.mxu0 0.0
    %429 = vmatprep.subr.mxu0 0.0
    %430 = vmatpush1.msra.mxu0 0.0
    %431 = vmatprep.subr.mxu0 %v308
    %432 = vmatpush1.msra.mxu0 %v307
    %433 = vmatprep.subr.mxu0 %v306
    %434 = vmatpush1.msra.mxu0 %v305
    %435 = vmatprep.subr.mxu0 0.0
    %436 = vmatpush2.msra.mxu0 0.0
    %437 = vmatprep.subr.mxu0 0.0
    %438 = vmatpush2.msra.mxu0 0.0
    %439 = vmatprep.subr.mxu0 0.0
    %440 = vmatpush2.msra.mxu0 0.0
    %441 = vmatprep.subr.mxu0 0.0
    %442 = vmatpush2.msra.mxu0 0.0
    %443 = vmatprep.subr.mxu0 0.0
    %444 = vmatpush2.msra.mxu0 0.0
    %445 = vmatprep.subr.mxu0 0.0
    %446 = vmatpush2.msra.mxu0 0.0
    %447 = vmatprep.subr.mxu0 0.0
    %448 = vmatpush2.msra.mxu0 0.0
    %449 = vmatprep.subr.mxu0 0.0
    %450 = vmatpush2.msra.mxu0 0.0
    %451 = vmatprep.subr.mxu0 0.0
    %452 = vmatpush2.msra.mxu0 0.0
    %453 = vmatprep.subr.mxu0 0.0
    %454 = vmatpush2.msra.mxu0 0.0
    %455 = vmatprep.subr.mxu0 0.0
    %456 = vmatpush2.msra.mxu0 0.0
    %457 = vmatprep.subr.mxu0 0.0
    %458 = vmatpush2.msra.mxu0 0.0
    %459 = vmatprep.subr.mxu0 0.0
    %460 = vmatpush2.msra.mxu0 0.0
    %461 = vmatprep.subr.mxu0 0.0
    %462 = vmatpush2.msra.mxu0 0.0
    %463 = vmatprep.subr.mxu0 0.0
    %464 = vmatpush2.msra.mxu0 0.0
    %465 = vmatprep.subr.mxu0 0.0
    %466 = vmatpush2.msra.mxu0 0.0
    %467 = vmatprep.mubr.f32.mxu0 0.0
    %468 = vmatmul.mubr.f32.gmra.mxu0 %v398
    %v469 = vpop.f32.mrf.mxu0
    %v470 = vadd.f32 0.0, %v469
    %v471 = vpop.f32.mrf.mxu0
    %v472 = vadd.f32 0.0, %v471
    %473 = vmatprep.mubr.f32.mxu0 0.0
    %474 = vmatmul.mubr.f32.gmra.mxu0 %v401
    %v475 = vpop.f32.mrf.mxu0
    %v476 = vadd.f32 0.0, %v475
    %v477 = vpop.f32.mrf.mxu0
    %v478 = vadd.f32 0.0, %v477
    %479 = vdwg.mxu0
    %v480 = vld [vmem:[#allocation10] sm:$0xff]
    %v481 = vld [vmem:[#allocation10 + $0x8] sm:$0xff]
    %v482 = vld [vmem:[#allocation10 + $0x10] sm:$0xff]
    %v483 = vld [vmem:[#allocation10 + $0x18] sm:$0xff]
    %v484 = vld [vmem:[#allocation10 + $0x20] sm:$0xff]
    %v485 = vld [vmem:[#allocation10 + $0x28] sm:$0xff]
    %v486 = vld [vmem:[#allocation10 + $0x30] sm:$0xff]
    %v487 = vld [vmem:[#allocation10 + $0x38] sm:$0xff]
    %v488 = vld [vmem:[#allocation10 + $0x40] sm:$0xff]
    %v489 = vld [vmem:[#allocation10 + $0x48] sm:$0xff]
    %v490 = vld [vmem:[#allocation10 + $0x50] sm:$0xff]
    %v491 = vld [vmem:[#allocation10 + $0x58] sm:$0xff]
    %v492 = vld [vmem:[#allocation10 + $0x60] sm:$0xff]
    %v493 = vld [vmem:[#allocation10 + $0x68] sm:$0xff]
    %v494 = vld [vmem:[#allocation10 + $0x70] sm:$0xff]
    %v495 = vld [vmem:[#allocation10 + $0x78] sm:$0xff]
    %v496 = vld [vmem:[#allocation10 + $0x80] sm:$0xff]
    %v497 = vld [vmem:[#allocation10 + $0x88] sm:$0xff]
    %v498 = vld [vmem:[#allocation10 + $0x90] sm:$0xff]
    %v499 = vld [vmem:[#allocation10 + $0x98] sm:$0xff]
    %v500 = vld [vmem:[#allocation10 + $0xa0] sm:$0xff]
    %v501 = vld [vmem:[#allocation10 + $0xa8] sm:$0xff]
    %v502 = vld [vmem:[#allocation10 + $0xb0] sm:$0xff]
    %v503 = vld [vmem:[#allocation10 + $0xb8] sm:$0xff]
    %v504 = vld [vmem:[#allocation10 + $0xc0] sm:$0xff]
    %v505 = vld [vmem:[#allocation10 + $0xc8] sm:$0xff]
    %v506 = vld [vmem:[#allocation10 + $0xd0] sm:$0xff]
    %v507 = vld [vmem:[#allocation10 + $0xd8] sm:$0xff]
    %v508 = vld [vmem:[#allocation10 + $0xe0] sm:$0xff]
    %v509 = vld [vmem:[#allocation10 + $0xe8] sm:$0xff]
    %v510 = vld [vmem:[#allocation10 + $0xf0] sm:$0xff]
    %v511 = vld [vmem:[#allocation10 + $0xf8] sm:$0xff]
    %v512 = vld [vmem:[#allocation10 + $0x100] sm:$0xff]
    %v513 = vld [vmem:[#allocation10 + $0x108] sm:$0xff]
    %v514 = vld [vmem:[#allocation10 + $0x110] sm:$0xff]
    %v515 = vld [vmem:[#allocation10 + $0x118] sm:$0xff]
    %v516 = vld [vmem:[#allocation10 + $0x120] sm:$0xff]
    %v517 = vld [vmem:[#allocation10 + $0x128] sm:$0xff]
    %v518 = vld [vmem:[#allocation10 + $0x130] sm:$0xff]
    %v519 = vld [vmem:[#allocation10 + $0x138] sm:$0xff]
    %v520 = vld [vmem:[#allocation10 + $0x140] sm:$0xff]
    %v521 = vld [vmem:[#allocation10 + $0x148] sm:$0xff]
    %v522 = vld [vmem:[#allocation10 + $0x150] sm:$0xff]
    %v523 = vld [vmem:[#allocation10 + $0x158] sm:$0xff]
    %v524 = vld [vmem:[#allocation10 + $0x160] sm:$0xff]
    %v525 = vld [vmem:[#allocation10 + $0x168] sm:$0xff]
    %v526 = vld [vmem:[#allocation10 + $0x170] sm:$0xff]
    %v527 = vld [vmem:[#allocation10 + $0x178] sm:$0xff]
    %v528 = vld [vmem:[#allocation10 + $0x180] sm:$0xff]
    %v529 = vld [vmem:[#allocation10 + $0x188] sm:$0xff]
    %v530 = vld [vmem:[#allocation10 + $0x190] sm:$0xff]
    %v531 = vld [vmem:[#allocation10 + $0x198] sm:$0xff]
    %v532 = vld [vmem:[#allocation10 + $0x1a0] sm:$0xff]
    %v533 = vld [vmem:[#allocation10 + $0x1a8] sm:$0xff]
    %v534 = vld [vmem:[#allocation10 + $0x1b0] sm:$0xff]
    %v535 = vld [vmem:[#allocation10 + $0x1b8] sm:$0xff]
    %v536 = vld [vmem:[#allocation10 + $0x1c0] sm:$0xff]
    %v537 = vld [vmem:[#allocation10 + $0x1c8] sm:$0xff]
    %v538 = vld [vmem:[#allocation10 + $0x1d0] sm:$0xff]
    %v539 = vld [vmem:[#allocation10 + $0x1d8] sm:$0xff]
    %v540 = vld [vmem:[#allocation10 + $0x1e0] sm:$0xff]
    %v541 = vld [vmem:[#allocation10 + $0x1e8] sm:$0xff]
    %v542 = vld [vmem:[#allocation10 + $0x1f0] sm:$0xff]
    %v543 = vld [vmem:[#allocation10 + $0x1f8] sm:$0xff]
    %v544 = vld [vmem:[#allocation11] sm:$0xff]
    %v545 = vld [vmem:[#allocation11 + $0x8] sm:$0xff]
    %v546 = vld [vmem:[#allocation11 + $0x10] sm:$0xff]
    %v547 = vld [vmem:[#allocation11 + $0x18] sm:$0xff]
    %v548 = vld [vmem:[#allocation11 + $0x20] sm:$0xff]
    %v549 = vld [vmem:[#allocation11 + $0x28] sm:$0xff]
    %v550 = vld [vmem:[#allocation11 + $0x30] sm:$0xff]
    %v551 = vld [vmem:[#allocation11 + $0x38] sm:$0xff]
    %v552 = vld [vmem:[#allocation11 + $0x40] sm:$0xff]
    %v553 = vld [vmem:[#allocation11 + $0x48] sm:$0xff]
    %v554 = vld [vmem:[#allocation11 + $0x50] sm:$0xff]
    %v555 = vld [vmem:[#allocation11 + $0x58] sm:$0xff]
    %v556 = vld [vmem:[#allocation11 + $0x60] sm:$0xff]
    %v557 = vld [vmem:[#allocation11 + $0x68] sm:$0xff]
    %v558 = vld [vmem:[#allocation11 + $0x70] sm:$0xff]
    %v559 = vld [vmem:[#allocation11 + $0x78] sm:$0xff]
    %v560 = vld [vmem:[#allocation11 + $0x80] sm:$0xff]
    %v561 = vld [vmem:[#allocation11 + $0x88] sm:$0xff]
    %v562 = vld [vmem:[#allocation11 + $0x90] sm:$0xff]
    %v563 = vld [vmem:[#allocation11 + $0x98] sm:$0xff]
    %v564 = vld [vmem:[#allocation11 + $0xa0] sm:$0xff]
    %v565 = vld [vmem:[#allocation11 + $0xa8] sm:$0xff]
    %v566 = vld [vmem:[#allocation11 + $0xb0] sm:$0xff]
    %v567 = vld [vmem:[#allocation11 + $0xb8] sm:$0xff]
    %v568 = vld [vmem:[#allocation11 + $0xc0] sm:$0xff]
    %v569 = vld [vmem:[#allocation11 + $0xc8] sm:$0xff]
    %v570 = vld [vmem:[#allocation11 + $0xd0] sm:$0xff]
    %v571 = vld [vmem:[#allocation11 + $0xd8] sm:$0xff]
    %v572 = vld [vmem:[#allocation11 + $0xe0] sm:$0xff]
    %v573 = vld [vmem:[#allocation11 + $0xe8] sm:$0xff]
    %v574 = vld [vmem:[#allocation11 + $0xf0] sm:$0xff]
    %v575 = vld [vmem:[#allocation11 + $0xf8] sm:$0xff]
    %v576 = vld [vmem:[#allocation11 + $0x100] sm:$0xff]
    %v577 = vld [vmem:[#allocation11 + $0x108] sm:$0xff]
    %v578 = vld [vmem:[#allocation11 + $0x110] sm:$0xff]
    %v579 = vld [vmem:[#allocation11 + $0x118] sm:$0xff]
    %v580 = vld [vmem:[#allocation11 + $0x120] sm:$0xff]
    %v581 = vld [vmem:[#allocation11 + $0x128] sm:$0xff]
    %v582 = vld [vmem:[#allocation11 + $0x130] sm:$0xff]
    %v583 = vld [vmem:[#allocation11 + $0x138] sm:$0xff]
    %v584 = vld [vmem:[#allocation11 + $0x140] sm:$0xff]
    %v585 = vld [vmem:[#allocation11 + $0x148] sm:$0xff]
    %v586 = vld [vmem:[#allocation11 + $0x150] sm:$0xff]
    %v587 = vld [vmem:[#allocation11 + $0x158] sm:$0xff]
    %v588 = vld [vmem:[#allocation11 + $0x160] sm:$0xff]
    %v589 = vld [vmem:[#allocation11 + $0x168] sm:$0xff]
    %v590 = vld [vmem:[#allocation11 + $0x170] sm:$0xff]
    %v591 = vld [vmem:[#allocation11 + $0x178] sm:$0xff]
    %v592 = vld [vmem:[#allocation11 + $0x180] sm:$0xff]
    %v593 = vld [vmem:[#allocation11 + $0x188] sm:$0xff]
    %v594 = vld [vmem:[#allocation11 + $0x190] sm:$0xff]
    %v595 = vld [vmem:[#allocation11 + $0x198] sm:$0xff]
    %v596 = vld [vmem:[#allocation11 + $0x1a0] sm:$0xff]
    %v597 = vld [vmem:[#allocation11 + $0x1a8] sm:$0xff]
    %v598 = vld [vmem:[#allocation11 + $0x1b0] sm:$0xff]
    %v599 = vld [vmem:[#allocation11 + $0x1b8] sm:$0xff]
    %v600 = vld [vmem:[#allocation11 + $0x1c0] sm:$0xff]
    %v601 = vld [vmem:[#allocation11 + $0x1c8] sm:$0xff]
    %v602 = vld [vmem:[#allocation11 + $0x1d0] sm:$0xff]
    %v603 = vld [vmem:[#allocation11 + $0x1d8] sm:$0xff]
    %v604 = vld [vmem:[#allocation11 + $0x1e0] sm:$0xff]
    %v605 = vld [vmem:[#allocation11 + $0x1e8] sm:$0xff]
    %v606 = vld [vmem:[#allocation11 + $0x1f0] sm:$0xff]
    %v607 = vld [vmem:[#allocation11 + $0x1f8] sm:$0xff]
    %608 = vmatprep.subr.mxu0 %v575
    %609 = vmatpush1.msra.mxu0 %v574
    %610 = vmatprep.subr.mxu0 %v573
    %611 = vmatpush1.msra.mxu0 %v572
    %612 = vmatprep.subr.mxu0 %v571
    %613 = vmatpush1.msra.mxu0 %v570
    %614 = vmatprep.subr.mxu0 %v569
    %615 = vmatpush1.msra.mxu0 %v568
    %616 = vmatprep.subr.mxu0 %v567
    %617 = vmatpush1.msra.mxu0 %v566
    %618 = vmatprep.subr.mxu0 %v565
    %619 = vmatpush1.msra.mxu0 %v564
    %620 = vmatprep.subr.mxu0 %v563
    %621 = vmatpush1.msra.mxu0 %v562
    %622 = vmatprep.subr.mxu0 %v561
    %623 = vmatpush1.msra.mxu0 %v560
    %624 = vmatprep.subr.mxu0 %v559
    %625 = vmatpush1.msra.mxu0 %v558
    %626 = vmatprep.subr.mxu0 %v557
    %627 = vmatpush1.msra.mxu0 %v556
    %628 = vmatprep.subr.mxu0 %v555
    %629 = vmatpush1.msra.mxu0 %v554
    %630 = vmatprep.subr.mxu0 %v553
    %631 = vmatpush1.msra.mxu0 %v552
    %632 = vmatprep.subr.mxu0 %v551
    %633 = vmatpush1.msra.mxu0 %v550
    %634 = vmatprep.subr.mxu0 %v549
    %635 = vmatpush1.msra.mxu0 %v548
    %636 = vmatprep.subr.mxu0 %v547
    %637 = vmatpush1.msra.mxu0 %v546
    %638 = vmatprep.subr.mxu0 %v545
    %639 = vmatpush1.msra.mxu0 %v544
    %640 = vmatprep.subr.mxu0 %v607
    %641 = vmatpush2.msra.mxu0 %v606
    %642 = vmatprep.subr.mxu0 %v605
    %643 = vmatpush2.msra.mxu0 %v604
    %644 = vmatprep.subr.mxu0 %v603
    %645 = vmatpush2.msra.mxu0 %v602
    %646 = vmatprep.subr.mxu0 %v601
    %647 = vmatpush2.msra.mxu0 %v600
    %648 = vmatprep.subr.mxu0 %v599
    %649 = vmatpush2.msra.mxu0 %v598
    %650 = vmatprep.subr.mxu0 %v597
    %651 = vmatpush2.msra.mxu0 %v596
    %652 = vmatprep.subr.mxu0 %v595
    %653 = vmatpush2.msra.mxu0 %v594
    %654 = vmatprep.subr.mxu0 %v593
    %655 = vmatpush2.msra.mxu0 %v592
    %656 = vmatprep.subr.mxu0 %v591
    %657 = vmatpush2.msra.mxu0 %v590
    %658 = vmatprep.subr.mxu0 %v589
    %659 = vmatpush2.msra.mxu0 %v588
    %660 = vmatprep.subr.mxu0 %v587
    %661 = vmatpush2.msra.mxu0 %v586
    %662 = vmatprep.subr.mxu0 %v585
    %663 = vmatpush2.msra.mxu0 %v584
    %664 = vmatprep.subr.mxu0 %v583
    %665 = vmatpush2.msra.mxu0 %v582
    %666 = vmatprep.subr.mxu0 %v581
    %667 = vmatpush2.msra.mxu0 %v580
    %668 = vmatprep.subr.mxu0 %v579
    %669 = vmatpush2.msra.mxu0 %v578
    %670 = vmatprep.subr.mxu0 %v577
    %671 = vmatpush2.msra.mxu0 %v576
    %672 = vmatprep.mubr.f32.mxu0 %v306
    %673 = vmatmul.mubr.f32.gmra.mxu0 %v305
    %v674 = vpop.f32.mrf.mxu0
    %v675 = vadd.f32 0.0, %v674
    %v676 = vpop.f32.mrf.mxu0
    %v677 = vadd.f32 0.0, %v676
    %678 = vmatprep.mubr.f32.mxu0 %v308
    %679 = vmatmul.mubr.f32.gmra.mxu0 %v307
    %v680 = vpop.f32.mrf.mxu0
    %v681 = vadd.f32 0.0, %v680
    %v682 = vpop.f32.mrf.mxu0
    %v683 = vadd.f32 0.0, %v682
    %684 = vdwg.mxu0
    %685 = vmatprep.subr.mxu0 %v511
    %686 = vmatpush1.msra.mxu0 %v510
    %687 = vmatprep.subr.mxu0 %v509
    %688 = vmatpush1.msra.mxu0 %v508
    %689 = vmatprep.subr.mxu0 %v507
    %690 = vmatpush1.msra.mxu0 %v506
    %691 = vmatprep.subr.mxu0 %v505
    %692 = vmatpush1.msra.mxu0 %v504
    %693 = vmatprep.subr.mxu0 %v503
    %694 = vmatpush1.msra.mxu0 %v502
    %695 = vmatprep.subr.mxu0 %v501
    %696 = vmatpush1.msra.mxu0 %v500
    %697 = vmatprep.subr.mxu0 %v499
    %698 = vmatpush1.msra.mxu0 %v498
    %699 = vmatprep.subr.mxu0 %v497
    %700 = vmatpush1.msra.mxu0 %v496
    %701 = vmatprep.subr.mxu0 %v495
    %702 = vmatpush1.msra.mxu0 %v494
    %703 = vmatprep.subr.mxu0 %v493
    %704 = vmatpush1.msra.mxu0 %v492
    %705 = vmatprep.subr.mxu0 %v491
    %706 = vmatpush1.msra.mxu0 %v490
    %707 = vmatprep.subr.mxu0 %v489
    %708 = vmatpush1.msra.mxu0 %v488
    %709 = vmatprep.subr.mxu0 %v487
    %710 = vmatpush1.msra.mxu0 %v486
    %711 = vmatprep.subr.mxu0 %v485
    %712 = vmatpush1.msra.mxu0 %v484
    %713 = vmatprep.subr.mxu0 %v483
    %714 = vmatpush1.msra.mxu0 %v482
    %715 = vmatprep.subr.mxu0 %v481
    %716 = vmatpush1.msra.mxu0 %v480
    %717 = vmatprep.subr.mxu0 %v543
    %718 = vmatpush2.msra.mxu0 %v542
    %719 = vmatprep.subr.mxu0 %v541
    %720 = vmatpush2.msra.mxu0 %v540
    %721 = vmatprep.subr.mxu0 %v539
    %722 = vmatpush2.msra.mxu0 %v538
    %723 = vmatprep.subr.mxu0 %v537
    %724 = vmatpush2.msra.mxu0 %v536
    %725 = vmatprep.subr.mxu0 %v535
    %726 = vmatpush2.msra.mxu0 %v534
    %727 = vmatprep.subr.mxu0 %v533
    %728 = vmatpush2.msra.mxu0 %v532
    %729 = vmatprep.subr.mxu0 %v531
    %730 = vmatpush2.msra.mxu0 %v530
    %731 = vmatprep.subr.mxu0 %v529
    %732 = vmatpush2.msra.mxu0 %v528
    %733 = vmatprep.subr.mxu0 %v527
    %734 = vmatpush2.msra.mxu0 %v526
    %735 = vmatprep.subr.mxu0 %v525
    %736 = vmatpush2.msra.mxu0 %v524
    %737 = vmatprep.subr.mxu0 %v523
    %738 = vmatpush2.msra.mxu0 %v522
    %739 = vmatprep.subr.mxu0 %v521
    %740 = vmatpush2.msra.mxu0 %v520
    %741 = vmatprep.subr.mxu0 %v519
    %742 = vmatpush2.msra.mxu0 %v518
    %743 = vmatprep.subr.mxu0 %v517
    %744 = vmatpush2.msra.mxu0 %v516
    %745 = vmatprep.subr.mxu0 %v515
    %746 = vmatpush2.msra.mxu0 %v514
    %747 = vmatprep.subr.mxu0 %v513
    %748 = vmatpush2.msra.mxu0 %v512
    %749 = vmatprep.mubr.f32.mxu0 %v387
    %750 = vmatmul.mubr.f32.gmra.mxu0 %v385
    %v751 = vpop.f32.mrf.mxu0
    %v752 = vadd.f32 %v675, %v751
    %v753 = vpop.f32.mrf.mxu0
    %v754 = vadd.f32 %v677, %v753
    %755 = vmatprep.mubr.f32.mxu0 %v393
    %756 = vmatmul.mubr.f32.gmra.mxu0 %v391
    %v757 = vpop.f32.mrf.mxu0
    %v758 = vadd.f32 %v681, %v757
    %v759 = vpop.f32.mrf.mxu0
    %v760 = vadd.f32 %v683, %v759
    %761 = vdwg.mxu0
    %v762 = vld [vmem:[#allocation13] sm:$0xff]
    %v763 = vld [vmem:[#allocation13 + $0x8] sm:$0xff]
    %v764 = vld [vmem:[#allocation13 + $0x10] sm:$0xff]
    %v765 = vld [vmem:[#allocation13 + $0x18] sm:$0xff]
    %v766 = vld [vmem:[#allocation13 + $0x20] sm:$0xff]
    %v767 = vld [vmem:[#allocation13 + $0x28] sm:$0xff]
    %v768 = vld [vmem:[#allocation13 + $0x30] sm:$0xff]
    %v769 = vld [vmem:[#allocation13 + $0x38] sm:$0xff]
    %v770 = vld [vmem:[#allocation13 + $0x40] sm:$0xff]
    %v771 = vld [vmem:[#allocation13 + $0x48] sm:$0xff]
    %v772 = vld [vmem:[#allocation13 + $0x50] sm:$0xff]
    %v773 = vld [vmem:[#allocation13 + $0x58] sm:$0xff]
    %v774 = vld [vmem:[#allocation13 + $0x60] sm:$0xff]
    %v775 = vld [vmem:[#allocation13 + $0x68] sm:$0xff]
    %v776 = vld [vmem:[#allocation13 + $0x70] sm:$0xff]
    %v777 = vld [vmem:[#allocation13 + $0x78] sm:$0xff]
    %v778 = vld [vmem:[#allocation13 + $0x80] sm:$0xff]
    %v779 = vld [vmem:[#allocation13 + $0x88] sm:$0xff]
    %v780 = vld [vmem:[#allocation13 + $0x90] sm:$0xff]
    %v781 = vld [vmem:[#allocation13 + $0x98] sm:$0xff]
    %v782 = vld [vmem:[#allocation13 + $0xa0] sm:$0xff]
    %v783 = vld [vmem:[#allocation13 + $0xa8] sm:$0xff]
    %v784 = vld [vmem:[#allocation13 + $0xb0] sm:$0xff]
    %v785 = vld [vmem:[#allocation13 + $0xb8] sm:$0xff]
    %v786 = vld [vmem:[#allocation13 + $0xc0] sm:$0xff]
    %v787 = vld [vmem:[#allocation13 + $0xc8] sm:$0xff]
    %v788 = vld [vmem:[#allocation13 + $0xd0] sm:$0xff]
    %v789 = vld [vmem:[#allocation13 + $0xd8] sm:$0xff]
    %v790 = vld [vmem:[#allocation13 + $0xe0] sm:$0xff]
    %v791 = vld [vmem:[#allocation13 + $0xe8] sm:$0xff]
    %v792 = vld [vmem:[#allocation13 + $0xf0] sm:$0xff]
    %v793 = vld [vmem:[#allocation13 + $0xf8] sm:$0xff]
    %v794 = vld [vmem:[#allocation13 + $0x100] sm:$0xff]
    %v795 = vld [vmem:[#allocation13 + $0x108] sm:$0xff]
    %v796 = vld [vmem:[#allocation13 + $0x110] sm:$0xff]
    %v797 = vld [vmem:[#allocation13 + $0x118] sm:$0xff]
    %v798 = vld [vmem:[#allocation13 + $0x120] sm:$0xff]
    %v799 = vld [vmem:[#allocation13 + $0x128] sm:$0xff]
    %v800 = vld [vmem:[#allocation13 + $0x130] sm:$0xff]
    %v801 = vld [vmem:[#allocation13 + $0x138] sm:$0xff]
    %v802 = vld [vmem:[#allocation13 + $0x140] sm:$0xff]
    %v803 = vld [vmem:[#allocation13 + $0x148] sm:$0xff]
    %v804 = vld [vmem:[#allocation13 + $0x150] sm:$0xff]
    %v805 = vld [vmem:[#allocation13 + $0x158] sm:$0xff]
    %v806 = vld [vmem:[#allocation13 + $0x160] sm:$0xff]
    %v807 = vld [vmem:[#allocation13 + $0x168] sm:$0xff]
    %v808 = vld [vmem:[#allocation13 + $0x170] sm:$0xff]
    %v809 = vld [vmem:[#allocation13 + $0x178] sm:$0xff]
    %v810 = vld [vmem:[#allocation13 + $0x180] sm:$0xff]
    %v811 = vld [vmem:[#allocation13 + $0x188] sm:$0xff]
    %v812 = vld [vmem:[#allocation13 + $0x190] sm:$0xff]
    %v813 = vld [vmem:[#allocation13 + $0x198] sm:$0xff]
    %v814 = vld [vmem:[#allocation13 + $0x1a0] sm:$0xff]
    %v815 = vld [vmem:[#allocation13 + $0x1a8] sm:$0xff]
    %v816 = vld [vmem:[#allocation13 + $0x1b0] sm:$0xff]
    %v817 = vld [vmem:[#allocation13 + $0x1b8] sm:$0xff]
    %v818 = vld [vmem:[#allocation13 + $0x1c0] sm:$0xff]
    %v819 = vld [vmem:[#allocation13 + $0x1c8] sm:$0xff]
    %v820 = vld [vmem:[#allocation13 + $0x1d0] sm:$0xff]
    %v821 = vld [vmem:[#allocation13 + $0x1d8] sm:$0xff]
    %v822 = vld [vmem:[#allocation13 + $0x1e0] sm:$0xff]
    %v823 = vld [vmem:[#allocation13 + $0x1e8] sm:$0xff]
    %v824 = vld [vmem:[#allocation13 + $0x1f0] sm:$0xff]
    %v825 = vld [vmem:[#allocation13 + $0x1f8] sm:$0xff]
    %826 = vmatprep.subr.mxu0 %v793
    %827 = vmatpush1.msra.mxu0 %v792
    %828 = vmatprep.subr.mxu0 %v791
    %829 = vmatpush1.msra.mxu0 %v790
    %830 = vmatprep.subr.mxu0 %v789
    %831 = vmatpush1.msra.mxu0 %v788
    %832 = vmatprep.subr.mxu0 %v787
    %833 = vmatpush1.msra.mxu0 %v786
    %834 = vmatprep.subr.mxu0 %v785
    %835 = vmatpush1.msra.mxu0 %v784
    %836 = vmatprep.subr.mxu0 %v783
    %837 = vmatpush1.msra.mxu0 %v782
    %838 = vmatprep.subr.mxu0 %v781
    %839 = vmatpush1.msra.mxu0 %v780
    %840 = vmatprep.subr.mxu0 %v779
    %841 = vmatpush1.msra.mxu0 %v778
    %842 = vmatprep.subr.mxu0 %v777
    %843 = vmatpush1.msra.mxu0 %v776
    %844 = vmatprep.subr.mxu0 %v775
    %845 = vmatpush1.msra.mxu0 %v774
    %846 = vmatprep.subr.mxu0 %v773
    %847 = vmatpush1.msra.mxu0 %v772
    %848 = vmatprep.subr.mxu0 %v771
    %849 = vmatpush1.msra.mxu0 %v770
    %850 = vmatprep.subr.mxu0 %v769
    %851 = vmatpush1.msra.mxu0 %v768
    %852 = vmatprep.subr.mxu0 %v767
    %853 = vmatpush1.msra.mxu0 %v766
    %854 = vmatprep.subr.mxu0 %v765
    %855 = vmatpush1.msra.mxu0 %v764
    %856 = vmatprep.subr.mxu0 %v763
    %857 = vmatpush1.msra.mxu0 %v762
    %858 = vmatprep.subr.mxu0 %v825
    %859 = vmatpush2.msra.mxu0 %v824
    %860 = vmatprep.subr.mxu0 %v823
    %861 = vmatpush2.msra.mxu0 %v822
    %862 = vmatprep.subr.mxu0 %v821
    %863 = vmatpush2.msra.mxu0 %v820
    %864 = vmatprep.subr.mxu0 %v819
    %865 = vmatpush2.msra.mxu0 %v818
    %866 = vmatprep.subr.mxu0 %v817
    %867 = vmatpush2.msra.mxu0 %v816
    %868 = vmatprep.subr.mxu0 %v815
    %869 = vmatpush2.msra.mxu0 %v814
    %870 = vmatprep.subr.mxu0 %v813
    %871 = vmatpush2.msra.mxu0 %v812
    %872 = vmatprep.subr.mxu0 %v811
    %873 = vmatpush2.msra.mxu0 %v810
    %874 = vmatprep.subr.mxu0 %v809
    %875 = vmatpush2.msra.mxu0 %v808
    %876 = vmatprep.subr.mxu0 %v807
    %877 = vmatpush2.msra.mxu0 %v806
    %878 = vmatprep.subr.mxu0 %v805
    %879 = vmatpush2.msra.mxu0 %v804
    %880 = vmatprep.subr.mxu0 %v803
    %881 = vmatpush2.msra.mxu0 %v802
    %882 = vmatprep.subr.mxu0 %v801
    %883 = vmatpush2.msra.mxu0 %v800
    %884 = vmatprep.subr.mxu0 %v799
    %885 = vmatpush2.msra.mxu0 %v798
    %886 = vmatprep.subr.mxu0 %v797
    %887 = vmatpush2.msra.mxu0 %v796
    %888 = vmatprep.subr.mxu0 %v795
    %889 = vmatpush2.msra.mxu0 %v794
    %890 = vmatprep.mubr.f32.mxu0 %v472
    %891 = vmatmul.mubr.f32.gmra.mxu0 %v470
    %v892 = vpop.f32.mrf.mxu0
    %v893 = vadd.f32 0.0, %v892
    %v894 = vpop.f32.mrf.mxu0
    %v895 = vadd.f32 0.0, %v894
    %896 = vmatprep.mubr.f32.mxu0 %v478
    %897 = vmatmul.mubr.f32.gmra.mxu0 %v476
    %v898 = vpop.f32.mrf.mxu0
    %v899 = vadd.f32 0.0, %v898
    %v900 = vpop.f32.mrf.mxu0
    %v901 = vadd.f32 0.0, %v900
    %902 = vdwg.mxu0
    %v903 = vadd.f32 %v752, %v893
    %v904 = vadd.f32 %v754, %v895
    %v905 = vadd.f32 %v758, %v899
    %v906 = vadd.f32 %v760, %v901
    %v907 = vld [vmem:[%s8] sm:$0x3]
    %v909 = vlaneseq
    %v910 = vshrl.u32 %v909, 7
    %v911 = vsub.s32 0, %v910
    %v912 = vrot.slane %v907, %v911
    %v913 = vlaneseq
    %v914 = vshrl.u32 %v913, 7
    %v915 = vsub.s32 1, %v914
    %v916 = vrot.slane %v907, %v915
    %v919 = vadd.f32 %v903, %v912
    %v920 = vadd.f32 %v904, %v916
    %v921 = vadd.f32 %v905, %v912
    %v922 = vadd.f32 %v906, %v916
    %v923 = vmax.f32 %v919, 0.0
    %v924 = vmax.f32 %v920, 0.0
    %v925 = vmax.f32 %v921, 0.0
    %v926 = vmax.f32 %v922, 0.0
    %v927 = vld [vmem:[#allocation14] sm:$0xff]
    %v928 = vld [vmem:[#allocation14 + $0x8] sm:$0xff]
    %v929 = vld [vmem:[#allocation14 + $0x10] sm:$0xff]
    %v930 = vld [vmem:[#allocation14 + $0x18] sm:$0xff]
    %v931 = vld [vmem:[#allocation14 + $0x20] sm:$0xff]
    %v932 = vld [vmem:[#allocation14 + $0x28] sm:$0xff]
    %v933 = vld [vmem:[#allocation14 + $0x30] sm:$0xff]
    %v934 = vld [vmem:[#allocation14 + $0x38] sm:$0xff]
    %v935 = vld [vmem:[#allocation14 + $0x40] sm:$0xff]
    %v936 = vld [vmem:[#allocation14 + $0x48] sm:$0xff]
    %v937 = vld [vmem:[#allocation14 + $0x50] sm:$0xff]
    %v938 = vld [vmem:[#allocation14 + $0x58] sm:$0xff]
    %v939 = vld [vmem:[#allocation14 + $0x60] sm:$0xff]
    %v940 = vld [vmem:[#allocation14 + $0x68] sm:$0xff]
    %v941 = vld [vmem:[#allocation14 + $0x70] sm:$0xff]
    %v942 = vld [vmem:[#allocation14 + $0x78] sm:$0xff]
    %v943 = vld [vmem:[#allocation14 + $0x80] sm:$0xff]
    %v944 = vld [vmem:[#allocation14 + $0x88] sm:$0xff]
    %v945 = vld [vmem:[#allocation14 + $0x90] sm:$0xff]
    %v946 = vld [vmem:[#allocation14 + $0x98] sm:$0xff]
    %v947 = vld [vmem:[#allocation14 + $0xa0] sm:$0xff]
    %v948 = vld [vmem:[#allocation14 + $0xa8] sm:$0xff]
    %v949 = vld [vmem:[#allocation14 + $0xb0] sm:$0xff]
    %v950 = vld [vmem:[#allocation14 + $0xb8] sm:$0xff]
    %v951 = vld [vmem:[#allocation14 + $0xc0] sm:$0xff]
    %v952 = vld [vmem:[#allocation14 + $0xc8] sm:$0xff]
    %v953 = vld [vmem:[#allocation14 + $0xd0] sm:$0xff]
    %v954 = vld [vmem:[#allocation14 + $0xd8] sm:$0xff]
    %v955 = vld [vmem:[#allocation14 + $0xe0] sm:$0xff]
    %v956 = vld [vmem:[#allocation14 + $0xe8] sm:$0xff]
    %v957 = vld [vmem:[#allocation14 + $0xf0] sm:$0xff]
    %v958 = vld [vmem:[#allocation14 + $0xf8] sm:$0xff]
    %v959 = vld [vmem:[#allocation14 + $0x100] sm:$0xff]
    %v960 = vld [vmem:[#allocation14 + $0x108] sm:$0xff]
    %v961 = vld [vmem:[#allocation14 + $0x110] sm:$0xff]
    %v962 = vld [vmem:[#allocation14 + $0x118] sm:$0xff]
    %v963 = vld [vmem:[#allocation14 + $0x120] sm:$0xff]
    %v964 = vld [vmem:[#allocation14 + $0x128] sm:$0xff]
    %v965 = vld [vmem:[#allocation14 + $0x130] sm:$0xff]
    %v966 = vld [vmem:[#allocation14 + $0x138] sm:$0xff]
    %v967 = vld [vmem:[#allocation14 + $0x140] sm:$0xff]
    %v968 = vld [vmem:[#allocation14 + $0x148] sm:$0xff]
    %v969 = vld [vmem:[#allocation14 + $0x150] sm:$0xff]
    %v970 = vld [vmem:[#allocation14 + $0x158] sm:$0xff]
    %v971 = vld [vmem:[#allocation14 + $0x160] sm:$0xff]
    %v972 = vld [vmem:[#allocation14 + $0x168] sm:$0xff]
    %v973 = vld [vmem:[#allocation14 + $0x170] sm:$0xff]
    %v974 = vld [vmem:[#allocation14 + $0x178] sm:$0xff]
    %v975 = vld [vmem:[#allocation14 + $0x180] sm:$0xff]
    %v976 = vld [vmem:[#allocation14 + $0x188] sm:$0xff]
    %v977 = vld [vmem:[#allocation14 + $0x190] sm:$0xff]
    %v978 = vld [vmem:[#allocation14 + $0x198] sm:$0xff]
    %v979 = vld [vmem:[#allocation14 + $0x1a0] sm:$0xff]
    %v980 = vld [vmem:[#allocation14 + $0x1a8] sm:$0xff]
    %v981 = vld [vmem:[#allocation14 + $0x1b0] sm:$0xff]
    %v982 = vld [vmem:[#allocation14 + $0x1b8] sm:$0xff]
    %v983 = vld [vmem:[#allocation14 + $0x1c0] sm:$0xff]
    %v984 = vld [vmem:[#allocation14 + $0x1c8] sm:$0xff]
    %v985 = vld [vmem:[#allocation14 + $0x1d0] sm:$0xff]
    %v986 = vld [vmem:[#allocation14 + $0x1d8] sm:$0xff]
    %v987 = vld [vmem:[#allocation14 + $0x1e0] sm:$0xff]
    %v988 = vld [vmem:[#allocation14 + $0x1e8] sm:$0xff]
    %v989 = vld [vmem:[#allocation14 + $0x1f0] sm:$0xff]
    %v990 = vld [vmem:[#allocation14 + $0x1f8] sm:$0xff]
    %v991 = vld [vmem:[%s10] sm:$0x3]
    %v993 = vlaneseq
    %v994 = vshrl.u32 %v993, 7
    %v995 = vsub.s32 0, %v994
    %v996 = vrot.slane %v991, %v995
    %v997 = vlaneseq
    %v998 = vshrl.u32 %v997, 7
    %v999 = vsub.s32 1, %v998
    %v1000 = vrot.slane %v991, %v999
    %1003 = vmatprep.subr.mxu0 %v958
    %1004 = vmatpush1.msra.mxu0 %v957
    %1005 = vmatprep.subr.mxu0 %v956
    %1006 = vmatpush1.msra.mxu0 %v955
    %1007 = vmatprep.subr.mxu0 %v954
    %1008 = vmatpush1.msra.mxu0 %v953
    %1009 = vmatprep.subr.mxu0 %v952
    %1010 = vmatpush1.msra.mxu0 %v951
    %1011 = vmatprep.subr.mxu0 %v950
    %1012 = vmatpush1.msra.mxu0 %v949
    %1013 = vmatprep.subr.mxu0 %v948
    %1014 = vmatpush1.msra.mxu0 %v947
    %1015 = vmatprep.subr.mxu0 %v946
    %1016 = vmatpush1.msra.mxu0 %v945
    %1017 = vmatprep.subr.mxu0 %v944
    %1018 = vmatpush1.msra.mxu0 %v943
    %1019 = vmatprep.subr.mxu0 %v942
    %1020 = vmatpush1.msra.mxu0 %v941
    %1021 = vmatprep.subr.mxu0 %v940
    %1022 = vmatpush1.msra.mxu0 %v939
    %1023 = vmatprep.subr.mxu0 %v938
    %1024 = vmatpush1.msra.mxu0 %v937
    %1025 = vmatprep.subr.mxu0 %v936
    %1026 = vmatpush1.msra.mxu0 %v935
    %1027 = vmatprep.subr.mxu0 %v934
    %1028 = vmatpush1.msra.mxu0 %v933
    %1029 = vmatprep.subr.mxu0 %v932
    %1030 = vmatpush1.msra.mxu0 %v931
    %1031 = vmatprep.subr.mxu0 %v930
    %1032 = vmatpush1.msra.mxu0 %v929
    %1033 = vmatprep.subr.mxu0 %v928
    %1034 = vmatpush1.msra.mxu0 %v927
    %1035 = vmatprep.subr.mxu0 %v990
    %1036 = vmatpush2.msra.mxu0 %v989
    %1037 = vmatprep.subr.mxu0 %v988
    %1038 = vmatpush2.msra.mxu0 %v987
    %1039 = vmatprep.subr.mxu0 %v986
    %1040 = vmatpush2.msra.mxu0 %v985
    %1041 = vmatprep.subr.mxu0 %v984
    %1042 = vmatpush2.msra.mxu0 %v983
    %1043 = vmatprep.subr.mxu0 %v982
    %1044 = vmatpush2.msra.mxu0 %v981
    %1045 = vmatprep.subr.mxu0 %v980
    %1046 = vmatpush2.msra.mxu0 %v979
    %1047 = vmatprep.subr.mxu0 %v978
    %1048 = vmatpush2.msra.mxu0 %v977
    %1049 = vmatprep.subr.mxu0 %v976
    %1050 = vmatpush2.msra.mxu0 %v975
    %1051 = vmatprep.subr.mxu0 %v974
    %1052 = vmatpush2.msra.mxu0 %v973
    %1053 = vmatprep.subr.mxu0 %v972
    %1054 = vmatpush2.msra.mxu0 %v971
    %1055 = vmatprep.subr.mxu0 %v970
    %1056 = vmatpush2.msra.mxu0 %v969
    %1057 = vmatprep.subr.mxu0 %v968
    %1058 = vmatpush2.msra.mxu0 %v967
    %1059 = vmatprep.subr.mxu0 %v966
    %1060 = vmatpush2.msra.mxu0 %v965
    %1061 = vmatprep.subr.mxu0 %v964
    %1062 = vmatpush2.msra.mxu0 %v963
    %1063 = vmatprep.subr.mxu0 %v962
    %1064 = vmatpush2.msra.mxu0 %v961
    %1065 = vmatprep.subr.mxu0 %v960
    %1066 = vmatpush2.msra.mxu0 %v959
    %1067 = vmatprep.mubr.f32.mxu0 %v924
    %1068 = vmatmul.mubr.f32.gmra.mxu0 %v923
    %v1069 = vpop.f32.mrf.mxu0
    %v1070 = vadd.f32 %v996, %v1069
    %v1071 = vpop.f32.mrf.mxu0
    %v1072 = vadd.f32 %v1000, %v1071
    %1073 = vmatprep.mubr.f32.mxu0 %v926
    %1074 = vmatmul.mubr.f32.gmra.mxu0 %v925
    %v1075 = vpop.f32.mrf.mxu0
    %v1076 = vadd.f32 %v996, %v1075
    %v1077 = vpop.f32.mrf.mxu0
    %v1078 = vadd.f32 %v1000, %v1077
    %1079 = vdwg.mxu0
    %v1080 = vadd.f32 %v1070, %v148
    %v1081 = vadd.f32 %v1072, %v149
    %v1082 = vadd.f32 %v1076, %v150
    %v1083 = vadd.f32 %v1078, %v151
    %v1084 = vmax.f32 %v1080, 0.0
    %v1085 = vmax.f32 %v1081, 0.0
    %v1086 = vmax.f32 %v1082, 0.0
    %v1087 = vmax.f32 %v1083, 0.0
    %1088 = vst [vmem:[#allocation16] sm:$0xff] %v1084
    %1089 = vst [vmem:[#allocation16 + $0x8] sm:$0xff] %v1085
    %1090 = vst [vmem:[#allocation16 + $0x10] sm:$0xff] %v1086
    %1091 = vst [vmem:[#allocation16 + $0x18] sm:$0xff] %v1087
    // Predicated region
    $region78: #{tpu_custom_call.1} parent=1 // pred_check
      _
    $region79: #{tpu_custom_call.1} parent=1 // pred_check_branch
      %1093 = sbr.rel (0) target = $region81
    $region80: #{tpu_custom_call.1} parent=1 // pred_region
      %s1095 = ssub.s32 512, 512
      %1096 = vsyncadd [#allocation4], %s1095
      %s1097 = sshll.u32 [#allocation16], 4
      %s1098 = int_to_ptr.vmem [resolvable:$true] %s1097
      %1103 = dma.vmem_to_hbm [thread:$0]  %s1098, 512, %s11, [#allocation4], 256, 256, 16
    $region81: #{tpu_custom_call.1} parent=1 // pred_fallthru
      _
    // Predicated region
    $region82: #{tpu_custom_call.1} parent=1 // pred_check
      _
    $region83: #{tpu_custom_call.1} parent=1 // pred_check_branch
      %1105 = sbr.rel (0) target = $region85
    $region84: #{tpu_custom_call.1} parent=1 // pred_region
      %1106 = dma.done [#allocation4], 512
    $region85: #{tpu_custom_call.1} parent=1 // pred_fallthru
      _
    %1107 = vsyncpa [#allocation3], 1
    %1108 = vsyncpa [#allocation6], 1
    %1109 = vsyncpa [#allocation9], 1
    %1110 = vsyncpa [#allocation12], 1
    %1111 = vsyncpa [#allocation15], 1
    %1112 = vsyncpa [#allocation4], 1

</llo_original>
